<compile_context>
chip_gen: v7x
topology: tpu7x:2x2x1
jax: 0.10.0
libtpu: 0.0.40
codegen_flags: <defaults>
</compile_context>

<pallas_src>
import functools

import jax
import jax.numpy as jnp
from jax.experimental import pallas as pl
from jax.experimental.pallas import tpu as pltpu


def _num_tensorcores() -> int:
    """Best-effort TensorCores-per-chip count (2 on v7x-style megacore).

    Falls back to 1 (safe: single batch block) if nothing is exposed."""
    try:
        dev = jax.devices()[0]
        for attr in ("num_cores", "core_count", "num_tensorcores"):
            v = getattr(dev, attr, None)
            if isinstance(v, int) and v > 0:
                return v
    except Exception:
        pass
    return 1


def hcnn_known_u_kernel(xu_ref, ws_ref, wu_ref, init_ref, out_ref, state_ref,
                        *, past_horizon, tt, n_state, n_y, n_u, split, bt):
    """One chunk of `tt` timesteps per grid iteration.

    xu_ref   : (tt, F, bt)   fused per-step features: rows [0, nY) = Y[t]
                             (zero on forecast/padded steps), rows
                             [nY, nY+nU) = U[t], remaining rows zero padding.
    ws_ref   : (nS, nS)      A_weight[:, :nS]   (state part, untransposed)
    wu_ref   : (nS, nU)      A_weight[:, nS:]   (U part,     untransposed)
    init_ref : (nS, 1)       learned initial state (transposed)
    out_ref  : (tt, nY, bt)  past_error (t < Tp) / forecast (t >= Tp)
    state_ref: (nS, bt) VMEM persistent recurrent state (batch on lanes)
    """
    c = pl.program_id(1)

    @pl.when(c == 0)
    def _():
        # state[0] = init_state.repeat(batchsize, 1)  (lane broadcast)
        state_ref[...] = jnp.broadcast_to(init_ref[...], (n_state, bt))

    # ---- per-chunk hoisted invariants (not re-materialized per step) ----
    ws = ws_ref[...]                                           # (nS, nS)
    wu = wu_ref[...]                                           # (nS, nU)
    wu_cols = [jnp.broadcast_to(wu[:, k:k + 1], (n_state, bt))
               for k in range(n_u)]                            # lane broadcasts
    row = jax.lax.broadcasted_iota(jnp.int32, (split, bt), 0)
    rowmask = row < n_y                                        # TF row mask

    state = state_ref[...]                                     # (nS, bt) f32
    t0 = c * tt

    for s in range(tt):                                        # unrolled chunk
        is_past = (t0 + s) < past_horizon                      # scalar (traced)
        xu_t = xu_ref[s]                                       # (F, bt)
        y = xu_t[:n_y, :]                                      # (nY, bt)

        # Select mask: teacher-force rows < nY on past steps only.
        sel = jnp.logical_and(is_past, rowmask)                # (split, bt)

        # Output BEFORE the state update:
        #   past:     expectation - Y[t]
        #   forecast: expectation        (explicitly guarded; no reliance on
        #                                 zero padding of the Y rows)
        out_ref[s] = state[:n_y, :] - jnp.where(sel[:n_y, :], y, 0.0)

        # Full teacher forcing (tf == 1): first nY state rows <- Y[t] on past
        # steps.  One VPU select on the sublane-aligned top tile, then a
        # tile-aligned concat with the untouched rows.
        top = jnp.where(sel, xu_t[:split, :], state[:split, :])
        if split < n_state:
            corrected = jnp.concatenate([top, state[split:, :]], axis=0)
        else:
            corrected = top

        act = jnp.tanh(corrected)

        # Single MXU op per step: (nS, nS) @ (nS, bt) -> (nS, bt).
        new_state = jnp.dot(ws, act, preferred_element_type=jnp.float32)

        # Tiny U contribution as nU rank-1 VPU updates (kept off the MXU,
        # hidden under the state matmul's result latency).
        for k in range(n_u):
            new_state = new_state + wu_cols[k] * xu_t[n_y + k:n_y + k + 1, :]

        state = new_state

    state_ref[...] = state                                     # once per chunk


def hcnn_known_u_forward(U, Y, init_state, A_weight, *, n_state, n_features_U,
                         n_features_Y, past_horizon, forecast_horizon,
                         time_block=8, batch_block=None):
    """U: (T, B, nU), Y: (Tp, B, nY), init_state: (1, nS),
    A_weight: (nS, nS + nU)  (the cell's nn.Linear weight, bias=False).
    Returns (T, B, nY) = concat([past_error, forecast], axis=0)."""
    T, B, nU = U.shape
    nY = n_features_Y
    assert T == past_horizon + forecast_horizon
    assert nU == n_features_U
    assert Y.shape == (past_horizon, B, nY)
    assert A_weight.shape == (n_state, n_state + nU)

    f32 = jnp.float32
    LANE = 128

    # --- lane (batch) padding: every load/store and the matmul N dim become
    #     lane-dense; bt is a 128 multiple (review item 3). ---
    B_pad = ((B + LANE - 1) // LANE) * LANE
    lanes = B_pad // LANE
    if batch_block is None:
        # On a 2-TensorCore chip (v7x) split the parallel batch axis so both
        # cores work; on 1-TC chips keep one block (splitting would just
        # serialize the latency-bound recurrence).
        if _num_tensorcores() >= 2 and lanes >= 2 and lanes % 2 == 0:
            bt = (lanes // 2) * LANE
        else:
            bt = B_pad
    else:
        bt = batch_block
    assert bt % LANE == 0 and B_pad % bt == 0, \
        "batch_block must be a multiple of 128 that divides the padded batch"

    # --- time chunking (review item 1) ---
    TT = max(1, min(time_block, T))
    T_pad = ((T + TT - 1) // TT) * TT

    # --- fused, sublane-padded U/Y slab (review items 2 & 7) ---
    F_pad = ((nY + nU + 7) // 8) * 8        # fused feature rows, 8-aligned
    split = ((nY + 7) // 8) * 8             # teacher-forcing select region
    assert n_state >= split, "n_state must be >= round_up(n_features_Y, 8)"

    XU = jnp.zeros((T_pad, F_pad, B_pad), f32)
    XU = XU.at[:past_horizon, :nY, :B].set(
        jnp.swapaxes(Y, 1, 2).astype(f32))                  # Y rows (past only)
    XU = XU.at[:T, nY:nY + nU, :B].set(
        jnp.swapaxes(U, 1, 2).astype(f32))                  # U rows

    ws = A_weight[:, :n_state].astype(f32)                  # (nS, nS)
    wu = A_weight[:, n_state:].astype(f32)                  # (nS, nU)
    init_t = jnp.transpose(init_state).astype(f32)          # (nS, 1)

    kernel = functools.partial(
        hcnn_known_u_kernel,
        past_horizon=past_horizon, tt=TT, n_state=n_state,
        n_y=nY, n_u=nU, split=split, bt=bt)

    grid = (B_pad // bt, T_pad // TT)        # (batch: parallel, time: serial)
    out_shape = jax.ShapeDtypeStruct((T_pad, nY, B_pad), f32)

    flops = 2 * T * B_pad * n_state * (n_state + nU)
    bytes_accessed = 4 * (XU.size + T_pad * nY * B_pad
                          + ws.size + wu.size + init_t.size)

    out_t = pl.pallas_call(
        kernel,
        out_shape=out_shape,
        grid_spec=pltpu.PrefetchScalarGridSpec(
            num_scalar_prefetch=0,
            grid=grid,
            in_specs=[
                pl.BlockSpec((TT, F_pad, bt), lambda b, c: (c, 0, b)),
                pl.BlockSpec((n_state, n_state), lambda b, c: (0, 0)),
                pl.BlockSpec((n_state, nU), lambda b, c: (0, 0)),
                pl.BlockSpec((n_state, 1), lambda b, c: (0, 0)),
            ],
            out_specs=pl.BlockSpec((TT, nY, bt), lambda b, c: (c, 0, b)),
            scratch_shapes=[pltpu.VMEM((n_state, bt), f32)],
        ),
        compiler_params=pltpu.CompilerParams(
            dimension_semantics=("parallel", "arbitrary")),
        cost_estimate=pl.CostEstimate(
            flops=flops,
            transcendentals=T * B_pad * n_state,
            bytes_accessed=bytes_accessed),
    )(XU, ws, wu, init_t)

    # (T_pad, nY, B_pad) -> (T, B, nY): drop time padding, batch padding.
    return jnp.swapaxes(out_t[:T], 1, 2)[:, :B, :]


def hcnn_known_u_reference(U, Y, init_state, A_weight, *, n_state,
                           n_features_Y, past_horizon, forecast_horizon):
    """Pure-JAX reference mirroring the PyTorch forward (eval, tf=1)."""
    B = Y.shape[1]
    state = jnp.broadcast_to(init_state, (B, n_state))
    outs = []
    for t in range(past_horizon):
        expectation = state[:, :n_features_Y]
        err = expectation - Y[t]
        outs.append(err)
        corrected = state.at[:, :n_features_Y].add(-err)
        aug = jnp.concatenate([jnp.tanh(corrected), U[t]], axis=1)
        state = aug @ A_weight.T
    for t in range(past_horizon, past_horizon + forecast_horizon):
        outs.append(state[:, :n_features_Y])
        aug = jnp.concatenate([jnp.tanh(state), U[t]], axis=1)
        state = aug @ A_weight.T
    return jnp.stack(outs, axis=0)


if __name__ == "__main__":
    # Small, module-consistent shapes.
    n_state_neurons = 32
    n_features_U = 4
    n_features_Y = 4
    past_horizon = 8
    forecast_horizon = 4
    batchsize = 2
    T = past_horizon + forecast_horizon

    key = jax.random.PRNGKey(0)
    k_u, k_y, k_init, k_w = jax.random.split(key, 4)

    U = jax.random.normal(k_u, (T, batchsize, n_features_U), dtype=jnp.float32)
    Y = jax.random.normal(k_y, (past_horizon, batchsize, n_features_Y),
                          dtype=jnp.float32)

    # Parameter shapes from __init__: init_state (1, nS); cell's A is
    # Linear(nS + nU -> nS, bias=False) => weight (nS, nS + nU).
    init_state = jax.random.normal(k_init, (1, n_state_neurons),
                                   dtype=jnp.float32)
    A_weight = 0.1 * jax.random.normal(
        k_w, (n_state_neurons, n_state_neurons + n_features_U),
        dtype=jnp.float32)

    out = hcnn_known_u_forward(
        U, Y, init_state, A_weight,
        n_state=n_state_neurons,
        n_features_U=n_features_U,
        n_features_Y=n_features_Y,
        past_horizon=past_horizon,
        forecast_horizon=forecast_horizon,
    )
    out = jax.block_until_ready(out)

    ref = hcnn_known_u_reference(
        U, Y, init_state, A_weight,
        n_state=n_state_neurons,
        n_features_Y=n_features_Y,
        past_horizon=past_horizon,
        forecast_horizon=forecast_horizon,
    )
    assert out.shape == (T, batchsize, n_features_Y)
    assert jnp.allclose(out, ref, rtol=1e-5, atol=1e-5), "mismatch vs reference"

    print("KERNEL_OK")
</pallas_src>

<mosaic_0001>
module attributes {stable_mosaic.version = 11 : i64} {
  func.func @hcnn_known_u_kernel(%arg0: i32, %arg1: i32, %arg2: memref<8x8x128xf32, #tpu.memory_space<vmem>>, %arg3: memref<32x32xf32, #tpu.memory_space<vmem>>, %arg4: memref<32x4xf32, #tpu.memory_space<vmem>>, %arg5: memref<32x1xf32, #tpu.memory_space<vmem>>, %arg6: memref<8x4x128xf32, #tpu.memory_space<vmem>>, %arg7: memref<32x128xf32, #tpu.memory_space<vmem>>) attributes {dimension_semantics = [#tpu.dimension_semantics<parallel>, #tpu.dimension_semantics<arbitrary>], iteration_bounds = array<i64: 1, 2>, scalar_prefetch = 0 : i64, scratch_operands = 1 : i64, tpu.core_type = #tpu.core_type<tc>, window_params = [{transform_indices = @transform_0, window_bounds = array<i64: 8, 8, 128>}, {pipeline_mode = #tpu.pipeline_mode<synchronous>, transform_indices = @transform_1, window_bounds = array<i64: 32, 32>}, {pipeline_mode = #tpu.pipeline_mode<synchronous>, transform_indices = @transform_2, window_bounds = array<i64: 32, 4>}, {pipeline_mode = #tpu.pipeline_mode<synchronous>, transform_indices = @transform_3, window_bounds = array<i64: 32, 1>}, {transform_indices = @transform_4, window_bounds = array<i64: 8, 4, 128>}]} {
    %c0_i32 = arith.constant 0 : i32
    %0 = arith.cmpi eq, %arg1, %c0_i32 : i32
    %1 = arith.extui %0 : i1 to i32
    %c0_i32_0 = arith.constant 0 : i32
    %2 = arith.cmpi ne, %1, %c0_i32_0 : i32
    scf.if %2 {
      %c0_74 = arith.constant 0 : index
      %c0_75 = arith.constant 0 : index
      %319 = vector.load %arg5[%c0_74, %c0_75] : memref<32x1xf32, #tpu.memory_space<vmem>>, vector<32x1xf32>
      %320 = vector.shape_cast %319 : vector<32x1xf32> to vector<32x1xf32>
      %321 = vector.broadcast %320 : vector<32x1xf32> to vector<32x128xf32>
      %c0_76 = arith.constant 0 : index
      %c0_77 = arith.constant 0 : index
      %322 = vector.load %arg7[%c0_76, %c0_77] : memref<32x128xf32, #tpu.memory_space<vmem>>, vector<32x128xf32>
      tpu.vector_store %arg7[%c0_76, %c0_77], %321 {strides = array<i32>} : memref<32x128xf32, #tpu.memory_space<vmem>>, vector<32x128xf32>,
    } else {
    }
    %c0 = arith.constant 0 : index
    %c0_1 = arith.constant 0 : index
    %3 = vector.load %arg3[%c0, %c0_1] : memref<32x32xf32, #tpu.memory_space<vmem>>, vector<32x32xf32>
    %c0_2 = arith.constant 0 : index
    %c0_3 = arith.constant 0 : index
    %4 = vector.load %arg4[%c0_2, %c0_3] : memref<32x4xf32, #tpu.memory_space<vmem>>, vector<32x4xf32>
    %5 = vector.extract_strided_slice %4 {offsets = [0, 0], sizes = [32, 1], strides = [1, 1]} : vector<32x4xf32> to vector<32x1xf32>
    %6 = vector.shape_cast %5 : vector<32x1xf32> to vector<32x1xf32>
    %7 = vector.broadcast %6 : vector<32x1xf32> to vector<32x128xf32>
    %8 = vector.extract_strided_slice %4 {offsets = [0, 1], sizes = [32, 1], strides = [1, 1]} : vector<32x4xf32> to vector<32x1xf32>
    %9 = vector.shape_cast %8 : vector<32x1xf32> to vector<32x1xf32>
    %10 = vector.broadcast %9 : vector<32x1xf32> to vector<32x128xf32>
    %11 = vector.extract_strided_slice %4 {offsets = [0, 2], sizes = [32, 1], strides = [1, 1]} : vector<32x4xf32> to vector<32x1xf32>
    %12 = vector.shape_cast %11 : vector<32x1xf32> to vector<32x1xf32>
    %13 = vector.broadcast %12 : vector<32x1xf32> to vector<32x128xf32>
    %14 = vector.extract_strided_slice %4 {offsets = [0, 3], sizes = [32, 1], strides = [1, 1]} : vector<32x4xf32> to vector<32x1xf32>
    %15 = vector.shape_cast %14 : vector<32x1xf32> to vector<32x1xf32>
    %16 = vector.broadcast %15 : vector<32x1xf32> to vector<32x128xf32>
    %17 = tpu.iota {dimensions = array<i32: 0>} : vector<8x128xi32>
    %c4_i32 = arith.constant 4 : i32
    %18 = vector.broadcast %c4_i32 : i32 to vector<8x128xi32>
    %19 = arith.cmpi slt, %17, %18 : vector<8x128xi32>
    %c0_4 = arith.constant 0 : index
    %c0_5 = arith.constant 0 : index
    %20 = vector.load %arg7[%c0_4, %c0_5] : memref<32x128xf32, #tpu.memory_space<vmem>>, vector<32x128xf32>
    %c8_i32 = arith.constant 8 : i32
    %21 = arith.muli %arg1, %c8_i32 : i32
    %c0_i32_6 = arith.constant 0 : i32
    %22 = arith.addi %21, %c0_i32_6 : i32
    %c8_i32_7 = arith.constant 8 : i32
    %23 = arith.cmpi slt, %22, %c8_i32_7 : i32
    %c0_8 = arith.constant 0 : index
    %c0_9 = arith.constant 0 : index
    %c0_10 = arith.constant 0 : index
    %24 = vector.load %arg2[%c0_8, %c0_9, %c0_10] : memref<8x8x128xf32, #tpu.memory_space<vmem>>, vector<1x8x128xf32>
    %25 = vector.shape_cast %24 : vector<1x8x128xf32> to vector<8x128xf32>
    %26 = vector.extract_strided_slice %25 {offsets = [0, 0], sizes = [4, 128], strides = [1, 1]} : vector<8x128xf32> to vector<4x128xf32>
    %27 = vector.broadcast %23 : i1 to vector<8x128xi1>
    %28 = arith.andi %27, %19 : vector<8x128xi1>
    %29 = vector.extract_strided_slice %20 {offsets = [0, 0], sizes = [4, 128], strides = [1, 1]} : vector<32x128xf32> to vector<4x128xf32>
    %30 = vector.extract_strided_slice %28 {offsets = [0, 0], sizes = [4, 128], strides = [1, 1]} : vector<8x128xi1> to vector<4x128xi1>
    %cst = arith.constant 0.000000e+00 : f32
    %31 = vector.broadcast %cst : f32 to vector<4x128xf32>
    %32 = arith.select %30, %26, %31 : vector<4x128xi1>, vector<4x128xf32>
    %33 = arith.subf %29, %32 : vector<4x128xf32>
    %c0_11 = arith.constant 0 : index
    %c0_12 = arith.constant 0 : index
    %c0_13 = arith.constant 0 : index
    %34 = vector.load %arg6[%c0_11, %c0_12, %c0_13] : memref<8x4x128xf32, #tpu.memory_space<vmem>>, vector<1x4x128xf32>
    %35 = vector.shape_cast %34 : vector<1x4x128xf32> to vector<4x128xf32>
    %36 = vector.shape_cast %33 : vector<4x128xf32> to vector<1x4x128xf32>
    tpu.vector_store %arg6[%c0_11, %c0_12, %c0_13], %36 {strides = array<i32>} : memref<8x4x128xf32, #tpu.memory_space<vmem>>, vector<1x4x128xf32>,
    %37 = vector.extract_strided_slice %20 {offsets = [0, 0], sizes = [8, 128], strides = [1, 1]} : vector<32x128xf32> to vector<8x128xf32>
    %38 = arith.select %28, %25, %37 : vector<8x128xi1>, vector<8x128xf32>
    %39 = vector.extract_strided_slice %20 {offsets = [8, 0], sizes = [24, 128], strides = [1, 1]} : vector<32x128xf32> to vector<24x128xf32>
    %40 = tpu.concatenate %38, %39 in 0 : vector<8x128xf32>, vector<24x128xf32> -> vector<32x128xf32>
    %41 = math.tanh %40 : vector<32x128xf32>
    %cst_14 = arith.constant dense<0.000000e+00> : vector<32x128xf32>
    %42 = tpu.matmul %3, %41, %cst_14 {dimension_numbers = #tpu.dot_dimension_numbers<[1], [0], [0], [1], [0, 0, 1, 1], [], []>} : vector<32x32xf32>, vector<32x128xf32>, vector<32x128xf32> -> vector<32x128xf32>
    %43 = vector.extract_strided_slice %25 {offsets = [4, 0], sizes = [1, 128], strides = [1, 1]} : vector<8x128xf32> to vector<1x128xf32>
    %44 = vector.broadcast %43 : vector<1x128xf32> to vector<32x128xf32>
    %45 = arith.mulf %7, %44 : vector<32x128xf32>
    %46 = arith.addf %42, %45 : vector<32x128xf32>
    %47 = vector.extract_strided_slice %25 {offsets = [5, 0], sizes = [1, 128], strides = [1, 1]} : vector<8x128xf32> to vector<1x128xf32>
    %48 = vector.broadcast %47 : vector<1x128xf32> to vector<32x128xf32>
    %49 = arith.mulf %10, %48 : vector<32x128xf32>
    %50 = arith.addf %46, %49 : vector<32x128xf32>
    %51 = vector.extract_strided_slice %25 {offsets = [6, 0], sizes = [1, 128], strides = [1, 1]} : vector<8x128xf32> to vector<1x128xf32>
    %52 = vector.broadcast %51 : vector<1x128xf32> to vector<32x128xf32>
    %53 = arith.mulf %13, %52 : vector<32x128xf32>
    %54 = arith.addf %50, %53 : vector<32x128xf32>
    %55 = vector.extract_strided_slice %25 {offsets = [7, 0], sizes = [1, 128], strides = [1, 1]} : vector<8x128xf32> to vector<1x128xf32>
    %56 = vector.broadcast %55 : vector<1x128xf32> to vector<32x128xf32>
    %57 = arith.mulf %16, %56 : vector<32x128xf32>
    %58 = arith.addf %54, %57 : vector<32x128xf32>
    %c1_i32 = arith.constant 1 : i32
    %59 = arith.addi %21, %c1_i32 : i32
    %c8_i32_15 = arith.constant 8 : i32
    %60 = arith.cmpi slt, %59, %c8_i32_15 : i32
    %c1 = arith.constant 1 : index
    %c0_16 = arith.constant 0 : index
    %c0_17 = arith.constant 0 : index
    %61 = vector.load %arg2[%c1, %c0_16, %c0_17] : memref<8x8x128xf32, #tpu.memory_space<vmem>>, vector<1x8x128xf32>
    %62 = vector.shape_cast %61 : vector<1x8x128xf32> to vector<8x128xf32>
    %63 = vector.extract_strided_slice %62 {offsets = [0, 0], sizes = [4, 128], strides = [1, 1]} : vector<8x128xf32> to vector<4x128xf32>
    %64 = vector.broadcast %60 : i1 to vector<8x128xi1>
    %65 = arith.andi %64, %19 : vector<8x128xi1>
    %66 = vector.extract_strided_slice %58 {offsets = [0, 0], sizes = [4, 128], strides = [1, 1]} : vector<32x128xf32> to vector<4x128xf32>
    %67 = vector.extract_strided_slice %65 {offsets = [0, 0], sizes = [4, 128], strides = [1, 1]} : vector<8x128xi1> to vector<4x128xi1>
    %cst_18 = arith.constant 0.000000e+00 : f32
    %68 = vector.broadcast %cst_18 : f32 to vector<4x128xf32>
    %69 = arith.select %67, %63, %68 : vector<4x128xi1>, vector<4x128xf32>
    %70 = arith.subf %66, %69 : vector<4x128xf32>
    %c1_19 = arith.constant 1 : index
    %c0_20 = arith.constant 0 : index
    %c0_21 = arith.constant 0 : index
    %71 = vector.load %arg6[%c1_19, %c0_20, %c0_21] : memref<8x4x128xf32, #tpu.memory_space<vmem>>, vector<1x4x128xf32>
    %72 = vector.shape_cast %71 : vector<1x4x128xf32> to vector<4x128xf32>
    %73 = vector.shape_cast %70 : vector<4x128xf32> to vector<1x4x128xf32>
    tpu.vector_store %arg6[%c1_19, %c0_20, %c0_21], %73 {strides = array<i32>} : memref<8x4x128xf32, #tpu.memory_space<vmem>>, vector<1x4x128xf32>,
    %74 = vector.extract_strided_slice %58 {offsets = [0, 0], sizes = [8, 128], strides = [1, 1]} : vector<32x128xf32> to vector<8x128xf32>
    %75 = arith.select %65, %62, %74 : vector<8x128xi1>, vector<8x128xf32>
    %76 = vector.extract_strided_slice %58 {offsets = [8, 0], sizes = [24, 128], strides = [1, 1]} : vector<32x128xf32> to vector<24x128xf32>
    %77 = tpu.concatenate %75, %76 in 0 : vector<8x128xf32>, vector<24x128xf32> -> vector<32x128xf32>
    %78 = math.tanh %77 : vector<32x128xf32>
    %cst_22 = arith.constant dense<0.000000e+00> : vector<32x128xf32>
    %79 = tpu.matmul %3, %78, %cst_22 {dimension_numbers = #tpu.dot_dimension_numbers<[1], [0], [0], [1], [0, 0, 1, 1], [], []>} : vector<32x32xf32>, vector<32x128xf32>, vector<32x128xf32> -> vector<32x128xf32>
    %80 = vector.extract_strided_slice %62 {offsets = [4, 0], sizes = [1, 128], strides = [1, 1]} : vector<8x128xf32> to vector<1x128xf32>
    %81 = vector.broadcast %80 : vector<1x128xf32> to vector<32x128xf32>
    %82 = arith.mulf %7, %81 : vector<32x128xf32>
    %83 = arith.addf %79, %82 : vector<32x128xf32>
    %84 = vector.extract_strided_slice %62 {offsets = [5, 0], sizes = [1, 128], strides = [1, 1]} : vector<8x128xf32> to vector<1x128xf32>
    %85 = vector.broadcast %84 : vector<1x128xf32> to vector<32x128xf32>
    %86 = arith.mulf %10, %85 : vector<32x128xf32>
    %87 = arith.addf %83, %86 : vector<32x128xf32>
    %88 = vector.extract_strided_slice %62 {offsets = [6, 0], sizes = [1, 128], strides = [1, 1]} : vector<8x128xf32> to vector<1x128xf32>
    %89 = vector.broadcast %88 : vector<1x128xf32> to vector<32x128xf32>
    %90 = arith.mulf %13, %89 : vector<32x128xf32>
    %91 = arith.addf %87, %90 : vector<32x128xf32>
    %92 = vector.extract_strided_slice %62 {offsets = [7, 0], sizes = [1, 128], strides = [1, 1]} : vector<8x128xf32> to vector<1x128xf32>
    %93 = vector.broadcast %92 : vector<1x128xf32> to vector<32x128xf32>
    %94 = arith.mulf %16, %93 : vector<32x128xf32>
    %95 = arith.addf %91, %94 : vector<32x128xf32>
    %c2_i32 = arith.constant 2 : i32
    %96 = arith.addi %21, %c2_i32 : i32
    %c8_i32_23 = arith.constant 8 : i32
    %97 = arith.cmpi slt, %96, %c8_i32_23 : i32
    %c2 = arith.constant 2 : index
    %c0_24 = arith.constant 0 : index
    %c0_25 = arith.constant 0 : index
    %98 = vector.load %arg2[%c2, %c0_24, %c0_25] : memref<8x8x128xf32, #tpu.memory_space<vmem>>, vector<1x8x128xf32>
    %99 = vector.shape_cast %98 : vector<1x8x128xf32> to vector<8x128xf32>
    %100 = vector.extract_strided_slice %99 {offsets = [0, 0], sizes = [4, 128], strides = [1, 1]} : vector<8x128xf32> to vector<4x128xf32>
    %101 = vector.broadcast %97 : i1 to vector<8x128xi1>
    %102 = arith.andi %101, %19 : vector<8x128xi1>
    %103 = vector.extract_strided_slice %95 {offsets = [0, 0], sizes = [4, 128], strides = [1, 1]} : vector<32x128xf32> to vector<4x128xf32>
    %104 = vector.extract_strided_slice %102 {offsets = [0, 0], sizes = [4, 128], strides = [1, 1]} : vector<8x128xi1> to vector<4x128xi1>
    %cst_26 = arith.constant 0.000000e+00 : f32
    %105 = vector.broadcast %cst_26 : f32 to vector<4x128xf32>
    %106 = arith.select %104, %100, %105 : vector<4x128xi1>, vector<4x128xf32>
    %107 = arith.subf %103, %106 : vector<4x128xf32>
    %c2_27 = arith.constant 2 : index
    %c0_28 = arith.constant 0 : index
    %c0_29 = arith.constant 0 : index
    %108 = vector.load %arg6[%c2_27, %c0_28, %c0_29] : memref<8x4x128xf32, #tpu.memory_space<vmem>>, vector<1x4x128xf32>
    %109 = vector.shape_cast %108 : vector<1x4x128xf32> to vector<4x128xf32>
    %110 = vector.shape_cast %107 : vector<4x128xf32> to vector<1x4x128xf32>
    tpu.vector_store %arg6[%c2_27, %c0_28, %c0_29], %110 {strides = array<i32>} : memref<8x4x128xf32, #tpu.memory_space<vmem>>, vector<1x4x128xf32>,
    %111 = vector.extract_strided_slice %95 {offsets = [0, 0], sizes = [8, 128], strides = [1, 1]} : vector<32x128xf32> to vector<8x128xf32>
    %112 = arith.select %102, %99, %111 : vector<8x128xi1>, vector<8x128xf32>
    %113 = vector.extract_strided_slice %95 {offsets = [8, 0], sizes = [24, 128], strides = [1, 1]} : vector<32x128xf32> to vector<24x128xf32>
    %114 = tpu.concatenate %112, %113 in 0 : vector<8x128xf32>, vector<24x128xf32> -> vector<32x128xf32>
    %115 = math.tanh %114 : vector<32x128xf32>
    %cst_30 = arith.constant dense<0.000000e+00> : vector<32x128xf32>
    %116 = tpu.matmul %3, %115, %cst_30 {dimension_numbers = #tpu.dot_dimension_numbers<[1], [0], [0], [1], [0, 0, 1, 1], [], []>} : vector<32x32xf32>, vector<32x128xf32>, vector<32x128xf32> -> vector<32x128xf32>
    %117 = vector.extract_strided_slice %99 {offsets = [4, 0], sizes = [1, 128], strides = [1, 1]} : vector<8x128xf32> to vector<1x128xf32>
    %118 = vector.broadcast %117 : vector<1x128xf32> to vector<32x128xf32>
    %119 = arith.mulf %7, %118 : vector<32x128xf32>
    %120 = arith.addf %116, %119 : vector<32x128xf32>
    %121 = vector.extract_strided_slice %99 {offsets = [5, 0], sizes = [1, 128], strides = [1, 1]} : vector<8x128xf32> to vector<1x128xf32>
    %122 = vector.broadcast %121 : vector<1x128xf32> to vector<32x128xf32>
    %123 = arith.mulf %10, %122 : vector<32x128xf32>
    %124 = arith.addf %120, %123 : vector<32x128xf32>
    %125 = vector.extract_strided_slice %99 {offsets = [6, 0], sizes = [1, 128], strides = [1, 1]} : vector<8x128xf32> to vector<1x128xf32>
    %126 = vector.broadcast %125 : vector<1x128xf32> to vector<32x128xf32>
    %127 = arith.mulf %13, %126 : vector<32x128xf32>
    %128 = arith.addf %124, %127 : vector<32x128xf32>
    %129 = vector.extract_strided_slice %99 {offsets = [7, 0], sizes = [1, 128], strides = [1, 1]} : vector<8x128xf32> to vector<1x128xf32>
    %130 = vector.broadcast %129 : vector<1x128xf32> to vector<32x128xf32>
    %131 = arith.mulf %16, %130 : vector<32x128xf32>
    %132 = arith.addf %128, %131 : vector<32x128xf32>
    %c3_i32 = arith.constant 3 : i32
    %133 = arith.addi %21, %c3_i32 : i32
    %c8_i32_31 = arith.constant 8 : i32
    %134 = arith.cmpi slt, %133, %c8_i32_31 : i32
    %c3 = arith.constant 3 : index
    %c0_32 = arith.constant 0 : index
    %c0_33 = arith.constant 0 : index
    %135 = vector.load %arg2[%c3, %c0_32, %c0_33] : memref<8x8x128xf32, #tpu.memory_space<vmem>>, vector<1x8x128xf32>
    %136 = vector.shape_cast %135 : vector<1x8x128xf32> to vector<8x128xf32>
    %137 = vector.extract_strided_slice %136 {offsets = [0, 0], sizes = [4, 128], strides = [1, 1]} : vector<8x128xf32> to vector<4x128xf32>
    %138 = vector.broadcast %134 : i1 to vector<8x128xi1>
    %139 = arith.andi %138, %19 : vector<8x128xi1>
    %140 = vector.extract_strided_slice %132 {offsets = [0, 0], sizes = [4, 128], strides = [1, 1]} : vector<32x128xf32> to vector<4x128xf32>
    %141 = vector.extract_strided_slice %139 {offsets = [0, 0], sizes = [4, 128], strides = [1, 1]} : vector<8x128xi1> to vector<4x128xi1>
    %cst_34 = arith.constant 0.000000e+00 : f32
    %142 = vector.broadcast %cst_34 : f32 to vector<4x128xf32>
    %143 = arith.select %141, %137, %142 : vector<4x128xi1>, vector<4x128xf32>
    %144 = arith.subf %140, %143 : vector<4x128xf32>
    %c3_35 = arith.constant 3 : index
    %c0_36 = arith.constant 0 : index
    %c0_37 = arith.constant 0 : index
    %145 = vector.load %arg6[%c3_35, %c0_36, %c0_37] : memref<8x4x128xf32, #tpu.memory_space<vmem>>, vector<1x4x128xf32>
    %146 = vector.shape_cast %145 : vector<1x4x128xf32> to vector<4x128xf32>
    %147 = vector.shape_cast %144 : vector<4x128xf32> to vector<1x4x128xf32>
    tpu.vector_store %arg6[%c3_35, %c0_36, %c0_37], %147 {strides = array<i32>} : memref<8x4x128xf32, #tpu.memory_space<vmem>>, vector<1x4x128xf32>,
    %148 = vector.extract_strided_slice %132 {offsets = [0, 0], sizes = [8, 128], strides = [1, 1]} : vector<32x128xf32> to vector<8x128xf32>
    %149 = arith.select %139, %136, %148 : vector<8x128xi1>, vector<8x128xf32>
    %150 = vector.extract_strided_slice %132 {offsets = [8, 0], sizes = [24, 128], strides = [1, 1]} : vector<32x128xf32> to vector<24x128xf32>
    %151 = tpu.concatenate %149, %150 in 0 : vector<8x128xf32>, vector<24x128xf32> -> vector<32x128xf32>
    %152 = math.tanh %151 : vector<32x128xf32>
    %cst_38 = arith.constant dense<0.000000e+00> : vector<32x128xf32>
    %153 = tpu.matmul %3, %152, %cst_38 {dimension_numbers = #tpu.dot_dimension_numbers<[1], [0], [0], [1], [0, 0, 1, 1], [], []>} : vector<32x32xf32>, vector<32x128xf32>, vector<32x128xf32> -> vector<32x128xf32>
    %154 = vector.extract_strided_slice %136 {offsets = [4, 0], sizes = [1, 128], strides = [1, 1]} : vector<8x128xf32> to vector<1x128xf32>
    %155 = vector.broadcast %154 : vector<1x128xf32> to vector<32x128xf32>
    %156 = arith.mulf %7, %155 : vector<32x128xf32>
    %157 = arith.addf %153, %156 : vector<32x128xf32>
    %158 = vector.extract_strided_slice %136 {offsets = [5, 0], sizes = [1, 128], strides = [1, 1]} : vector<8x128xf32> to vector<1x128xf32>
    %159 = vector.broadcast %158 : vector<1x128xf32> to vector<32x128xf32>
    %160 = arith.mulf %10, %159 : vector<32x128xf32>
    %161 = arith.addf %157, %160 : vector<32x128xf32>
    %162 = vector.extract_strided_slice %136 {offsets = [6, 0], sizes = [1, 128], strides = [1, 1]} : vector<8x128xf32> to vector<1x128xf32>
    %163 = vector.broadcast %162 : vector<1x128xf32> to vector<32x128xf32>
    %164 = arith.mulf %13, %163 : vector<32x128xf32>
    %165 = arith.addf %161, %164 : vector<32x128xf32>
    %166 = vector.extract_strided_slice %136 {offsets = [7, 0], sizes = [1, 128], strides = [1, 1]} : vector<8x128xf32> to vector<1x128xf32>
    %167 = vector.broadcast %166 : vector<1x128xf32> to vector<32x128xf32>
    %168 = arith.mulf %16, %167 : vector<32x128xf32>
    %169 = arith.addf %165, %168 : vector<32x128xf32>
    %c4_i32_39 = arith.constant 4 : i32
    %170 = arith.addi %21, %c4_i32_39 : i32
    %c8_i32_40 = arith.constant 8 : i32
    %171 = arith.cmpi slt, %170, %c8_i32_40 : i32
    %c4 = arith.constant 4 : index
    %c0_41 = arith.constant 0 : index
    %c0_42 = arith.constant 0 : index
    %172 = vector.load %arg2[%c4, %c0_41, %c0_42] : memref<8x8x128xf32, #tpu.memory_space<vmem>>, vector<1x8x128xf32>
    %173 = vector.shape_cast %172 : vector<1x8x128xf32> to vector<8x128xf32>
    %174 = vector.extract_strided_slice %173 {offsets = [0, 0], sizes = [4, 128], strides = [1, 1]} : vector<8x128xf32> to vector<4x128xf32>
    %175 = vector.broadcast %171 : i1 to vector<8x128xi1>
    %176 = arith.andi %175, %19 : vector<8x128xi1>
    %177 = vector.extract_strided_slice %169 {offsets = [0, 0], sizes = [4, 128], strides = [1, 1]} : vector<32x128xf32> to vector<4x128xf32>
    %178 = vector.extract_strided_slice %176 {offsets = [0, 0], sizes = [4, 128], strides = [1, 1]} : vector<8x128xi1> to vector<4x128xi1>
    %cst_43 = arith.constant 0.000000e+00 : f32
    %179 = vector.broadcast %cst_43 : f32 to vector<4x128xf32>
    %180 = arith.select %178, %174, %179 : vector<4x128xi1>, vector<4x128xf32>
    %181 = arith.subf %177, %180 : vector<4x128xf32>
    %c4_44 = arith.constant 4 : index
    %c0_45 = arith.constant 0 : index
    %c0_46 = arith.constant 0 : index
    %182 = vector.load %arg6[%c4_44, %c0_45, %c0_46] : memref<8x4x128xf32, #tpu.memory_space<vmem>>, vector<1x4x128xf32>
    %183 = vector.shape_cast %182 : vector<1x4x128xf32> to vector<4x128xf32>
    %184 = vector.shape_cast %181 : vector<4x128xf32> to vector<1x4x128xf32>
    tpu.vector_store %arg6[%c4_44, %c0_45, %c0_46], %184 {strides = array<i32>} : memref<8x4x128xf32, #tpu.memory_space<vmem>>, vector<1x4x128xf32>,
    %185 = vector.extract_strided_slice %169 {offsets = [0, 0], sizes = [8, 128], strides = [1, 1]} : vector<32x128xf32> to vector<8x128xf32>
    %186 = arith.select %176, %173, %185 : vector<8x128xi1>, vector<8x128xf32>
    %187 = vector.extract_strided_slice %169 {offsets = [8, 0], sizes = [24, 128], strides = [1, 1]} : vector<32x128xf32> to vector<24x128xf32>
    %188 = tpu.concatenate %186, %187 in 0 : vector<8x128xf32>, vector<24x128xf32> -> vector<32x128xf32>
    %189 = math.tanh %188 : vector<32x128xf32>
    %cst_47 = arith.constant dense<0.000000e+00> : vector<32x128xf32>
    %190 = tpu.matmul %3, %189, %cst_47 {dimension_numbers = #tpu.dot_dimension_numbers<[1], [0], [0], [1], [0, 0, 1, 1], [], []>} : vector<32x32xf32>, vector<32x128xf32>, vector<32x128xf32> -> vector<32x128xf32>
    %191 = vector.extract_strided_slice %173 {offsets = [4, 0], sizes = [1, 128], strides = [1, 1]} : vector<8x128xf32> to vector<1x128xf32>
    %192 = vector.broadcast %191 : vector<1x128xf32> to vector<32x128xf32>
    %193 = arith.mulf %7, %192 : vector<32x128xf32>
    %194 = arith.addf %190, %193 : vector<32x128xf32>
    %195 = vector.extract_strided_slice %173 {offsets = [5, 0], sizes = [1, 128], strides = [1, 1]} : vector<8x128xf32> to vector<1x128xf32>
    %196 = vector.broadcast %195 : vector<1x128xf32> to vector<32x128xf32>
    %197 = arith.mulf %10, %196 : vector<32x128xf32>
    %198 = arith.addf %194, %197 : vector<32x128xf32>
    %199 = vector.extract_strided_slice %173 {offsets = [6, 0], sizes = [1, 128], strides = [1, 1]} : vector<8x128xf32> to vector<1x128xf32>
    %200 = vector.broadcast %199 : vector<1x128xf32> to vector<32x128xf32>
    %201 = arith.mulf %13, %200 : vector<32x128xf32>
    %202 = arith.addf %198, %201 : vector<32x128xf32>
    %203 = vector.extract_strided_slice %173 {offsets = [7, 0], sizes = [1, 128], strides = [1, 1]} : vector<8x128xf32> to vector<1x128xf32>
    %204 = vector.broadcast %203 : vector<1x128xf32> to vector<32x128xf32>
    %205 = arith.mulf %16, %204 : vector<32x128xf32>
    %206 = arith.addf %202, %205 : vector<32x128xf32>
    %c5_i32 = arith.constant 5 : i32
    %207 = arith.addi %21, %c5_i32 : i32
    %c8_i32_48 = arith.constant 8 : i32
    %208 = arith.cmpi slt, %207, %c8_i32_48 : i32
    %c5 = arith.constant 5 : index
    %c0_49 = arith.constant 0 : index
    %c0_50 = arith.constant 0 : index
    %209 = vector.load %arg2[%c5, %c0_49, %c0_50] : memref<8x8x128xf32, #tpu.memory_space<vmem>>, vector<1x8x128xf32>
    %210 = vector.shape_cast %209 : vector<1x8x128xf32> to vector<8x128xf32>
    %211 = vector.extract_strided_slice %210 {offsets = [0, 0], sizes = [4, 128], strides = [1, 1]} : vector<8x128xf32> to vector<4x128xf32>
    %212 = vector.broadcast %208 : i1 to vector<8x128xi1>
    %213 = arith.andi %212, %19 : vector<8x128xi1>
    %214 = vector.extract_strided_slice %206 {offsets = [0, 0], sizes = [4, 128], strides = [1, 1]} : vector<32x128xf32> to vector<4x128xf32>
    %215 = vector.extract_strided_slice %213 {offsets = [0, 0], sizes = [4, 128], strides = [1, 1]} : vector<8x128xi1> to vector<4x128xi1>
    %cst_51 = arith.constant 0.000000e+00 : f32
    %216 = vector.broadcast %cst_51 : f32 to vector<4x128xf32>
    %217 = arith.select %215, %211, %216 : vector<4x128xi1>, vector<4x128xf32>
    %218 = arith.subf %214, %217 : vector<4x128xf32>
    %c5_52 = arith.constant 5 : index
    %c0_53 = arith.constant 0 : index
    %c0_54 = arith.constant 0 : index
    %219 = vector.load %arg6[%c5_52, %c0_53, %c0_54] : memref<8x4x128xf32, #tpu.memory_space<vmem>>, vector<1x4x128xf32>
    %220 = vector.shape_cast %219 : vector<1x4x128xf32> to vector<4x128xf32>
    %221 = vector.shape_cast %218 : vector<4x128xf32> to vector<1x4x128xf32>
    tpu.vector_store %arg6[%c5_52, %c0_53, %c0_54], %221 {strides = array<i32>} : memref<8x4x128xf32, #tpu.memory_space<vmem>>, vector<1x4x128xf32>,
    %222 = vector.extract_strided_slice %206 {offsets = [0, 0], sizes = [8, 128], strides = [1, 1]} : vector<32x128xf32> to vector<8x128xf32>
    %223 = arith.select %213, %210, %222 : vector<8x128xi1>, vector<8x128xf32>
    %224 = vector.extract_strided_slice %206 {offsets = [8, 0], sizes = [24, 128], strides = [1, 1]} : vector<32x128xf32> to vector<24x128xf32>
    %225 = tpu.concatenate %223, %224 in 0 : vector<8x128xf32>, vector<24x128xf32> -> vector<32x128xf32>
    %226 = math.tanh %225 : vector<32x128xf32>
    %cst_55 = arith.constant dense<0.000000e+00> : vector<32x128xf32>
    %227 = tpu.matmul %3, %226, %cst_55 {dimension_numbers = #tpu.dot_dimension_numbers<[1], [0], [0], [1], [0, 0, 1, 1], [], []>} : vector<32x32xf32>, vector<32x128xf32>, vector<32x128xf32> -> vector<32x128xf32>
    %228 = vector.extract_strided_slice %210 {offsets = [4, 0], sizes = [1, 128], strides = [1, 1]} : vector<8x128xf32> to vector<1x128xf32>
    %229 = vector.broadcast %228 : vector<1x128xf32> to vector<32x128xf32>
    %230 = arith.mulf %7, %229 : vector<32x128xf32>
    %231 = arith.addf %227, %230 : vector<32x128xf32>
    %232 = vector.extract_strided_slice %210 {offsets = [5, 0], sizes = [1, 128], strides = [1, 1]} : vector<8x128xf32> to vector<1x128xf32>
    %233 = vector.broadcast %232 : vector<1x128xf32> to vector<32x128xf32>
    %234 = arith.mulf %10, %233 : vector<32x128xf32>
    %235 = arith.addf %231, %234 : vector<32x128xf32>
    %236 = vector.extract_strided_slice %210 {offsets = [6, 0], sizes = [1, 128], strides = [1, 1]} : vector<8x128xf32> to vector<1x128xf32>
    %237 = vector.broadcast %236 : vector<1x128xf32> to vector<32x128xf32>
    %238 = arith.mulf %13, %237 : vector<32x128xf32>
    %239 = arith.addf %235, %238 : vector<32x128xf32>
    %240 = vector.extract_strided_slice %210 {offsets = [7, 0], sizes = [1, 128], strides = [1, 1]} : vector<8x128xf32> to vector<1x128xf32>
    %241 = vector.broadcast %240 : vector<1x128xf32> to vector<32x128xf32>
    %242 = arith.mulf %16, %241 : vector<32x128xf32>
    %243 = arith.addf %239, %242 : vector<32x128xf32>
    %c6_i32 = arith.constant 6 : i32
    %244 = arith.addi %21, %c6_i32 : i32
    %c8_i32_56 = arith.constant 8 : i32
    %245 = arith.cmpi slt, %244, %c8_i32_56 : i32
    %c6 = arith.constant 6 : index
    %c0_57 = arith.constant 0 : index
    %c0_58 = arith.constant 0 : index
    %246 = vector.load %arg2[%c6, %c0_57, %c0_58] : memref<8x8x128xf32, #tpu.memory_space<vmem>>, vector<1x8x128xf32>
    %247 = vector.shape_cast %246 : vector<1x8x128xf32> to vector<8x128xf32>
    %248 = vector.extract_strided_slice %247 {offsets = [0, 0], sizes = [4, 128], strides = [1, 1]} : vector<8x128xf32> to vector<4x128xf32>
    %249 = vector.broadcast %245 : i1 to vector<8x128xi1>
    %250 = arith.andi %249, %19 : vector<8x128xi1>
    %251 = vector.extract_strided_slice %243 {offsets = [0, 0], sizes = [4, 128], strides = [1, 1]} : vector<32x128xf32> to vector<4x128xf32>
    %252 = vector.extract_strided_slice %250 {offsets = [0, 0], sizes = [4, 128], strides = [1, 1]} : vector<8x128xi1> to vector<4x128xi1>
    %cst_59 = arith.constant 0.000000e+00 : f32
    %253 = vector.broadcast %cst_59 : f32 to vector<4x128xf32>
    %254 = arith.select %252, %248, %253 : vector<4x128xi1>, vector<4x128xf32>
    %255 = arith.subf %251, %254 : vector<4x128xf32>
    %c6_60 = arith.constant 6 : index
    %c0_61 = arith.constant 0 : index
    %c0_62 = arith.constant 0 : index
    %256 = vector.load %arg6[%c6_60, %c0_61, %c0_62] : memref<8x4x128xf32, #tpu.memory_space<vmem>>, vector<1x4x128xf32>
    %257 = vector.shape_cast %256 : vector<1x4x128xf32> to vector<4x128xf32>
    %258 = vector.shape_cast %255 : vector<4x128xf32> to vector<1x4x128xf32>
    tpu.vector_store %arg6[%c6_60, %c0_61, %c0_62], %258 {strides = array<i32>} : memref<8x4x128xf32, #tpu.memory_space<vmem>>, vector<1x4x128xf32>,
    %259 = vector.extract_strided_slice %243 {offsets = [0, 0], sizes = [8, 128], strides = [1, 1]} : vector<32x128xf32> to vector<8x128xf32>
    %260 = arith.select %250, %247, %259 : vector<8x128xi1>, vector<8x128xf32>
    %261 = vector.extract_strided_slice %243 {offsets = [8, 0], sizes = [24, 128], strides = [1, 1]} : vector<32x128xf32> to vector<24x128xf32>
    %262 = tpu.concatenate %260, %261 in 0 : vector<8x128xf32>, vector<24x128xf32> -> vector<32x128xf32>
    %263 = math.tanh %262 : vector<32x128xf32>
    %cst_63 = arith.constant dense<0.000000e+00> : vector<32x128xf32>
    %264 = tpu.matmul %3, %263, %cst_63 {dimension_numbers = #tpu.dot_dimension_numbers<[1], [0], [0], [1], [0, 0, 1, 1], [], []>} : vector<32x32xf32>, vector<32x128xf32>, vector<32x128xf32> -> vector<32x128xf32>
    %265 = vector.extract_strided_slice %247 {offsets = [4, 0], sizes = [1, 128], strides = [1, 1]} : vector<8x128xf32> to vector<1x128xf32>
    %266 = vector.broadcast %265 : vector<1x128xf32> to vector<32x128xf32>
    %267 = arith.mulf %7, %266 : vector<32x128xf32>
    %268 = arith.addf %264, %267 : vector<32x128xf32>
    %269 = vector.extract_strided_slice %247 {offsets = [5, 0], sizes = [1, 128], strides = [1, 1]} : vector<8x128xf32> to vector<1x128xf32>
    %270 = vector.broadcast %269 : vector<1x128xf32> to vector<32x128xf32>
    %271 = arith.mulf %10, %270 : vector<32x128xf32>
    %272 = arith.addf %268, %271 : vector<32x128xf32>
    %273 = vector.extract_strided_slice %247 {offsets = [6, 0], sizes = [1, 128], strides = [1, 1]} : vector<8x128xf32> to vector<1x128xf32>
    %274 = vector.broadcast %273 : vector<1x128xf32> to vector<32x128xf32>
    %275 = arith.mulf %13, %274 : vector<32x128xf32>
    %276 = arith.addf %272, %275 : vector<32x128xf32>
    %277 = vector.extract_strided_slice %247 {offsets = [7, 0], sizes = [1, 128], strides = [1, 1]} : vector<8x128xf32> to vector<1x128xf32>
    %278 = vector.broadcast %277 : vector<1x128xf32> to vector<32x128xf32>
    %279 = arith.mulf %16, %278 : vector<32x128xf32>
    %280 = arith.addf %276, %279 : vector<32x128xf32>
    %c7_i32 = arith.constant 7 : i32
    %281 = arith.addi %21, %c7_i32 : i32
    %c8_i32_64 = arith.constant 8 : i32
    %282 = arith.cmpi slt, %281, %c8_i32_64 : i32
    %c7 = arith.constant 7 : index
    %c0_65 = arith.constant 0 : index
    %c0_66 = arith.constant 0 : index
    %283 = vector.load %arg2[%c7, %c0_65, %c0_66] : memref<8x8x128xf32, #tpu.memory_space<vmem>>, vector<1x8x128xf32>
    %284 = vector.shape_cast %283 : vector<1x8x128xf32> to vector<8x128xf32>
    %285 = vector.extract_strided_slice %284 {offsets = [0, 0], sizes = [4, 128], strides = [1, 1]} : vector<8x128xf32> to vector<4x128xf32>
    %286 = vector.broadcast %282 : i1 to vector<8x128xi1>
    %287 = arith.andi %286, %19 : vector<8x128xi1>
    %288 = vector.extract_strided_slice %280 {offsets = [0, 0], sizes = [4, 128], strides = [1, 1]} : vector<32x128xf32> to vector<4x128xf32>
    %289 = vector.extract_strided_slice %287 {offsets = [0, 0], sizes = [4, 128], strides = [1, 1]} : vector<8x128xi1> to vector<4x128xi1>
    %cst_67 = arith.constant 0.000000e+00 : f32
    %290 = vector.broadcast %cst_67 : f32 to vector<4x128xf32>
    %291 = arith.select %289, %285, %290 : vector<4x128xi1>, vector<4x128xf32>
    %292 = arith.subf %288, %291 : vector<4x128xf32>
    %c7_68 = arith.constant 7 : index
    %c0_69 = arith.constant 0 : index
    %c0_70 = arith.constant 0 : index
    %293 = vector.load %arg6[%c7_68, %c0_69, %c0_70] : memref<8x4x128xf32, #tpu.memory_space<vmem>>, vector<1x4x128xf32>
    %294 = vector.shape_cast %293 : vector<1x4x128xf32> to vector<4x128xf32>
    %295 = vector.shape_cast %292 : vector<4x128xf32> to vector<1x4x128xf32>
    tpu.vector_store %arg6[%c7_68, %c0_69, %c0_70], %295 {strides = array<i32>} : memref<8x4x128xf32, #tpu.memory_space<vmem>>, vector<1x4x128xf32>,
    %296 = vector.extract_strided_slice %280 {offsets = [0, 0], sizes = [8, 128], strides = [1, 1]} : vector<32x128xf32> to vector<8x128xf32>
    %297 = arith.select %287, %284, %296 : vector<8x128xi1>, vector<8x128xf32>
    %298 = vector.extract_strided_slice %280 {offsets = [8, 0], sizes = [24, 128], strides = [1, 1]} : vector<32x128xf32> to vector<24x128xf32>
    %299 = tpu.concatenate %297, %298 in 0 : vector<8x128xf32>, vector<24x128xf32> -> vector<32x128xf32>
    %300 = math.tanh %299 : vector<32x128xf32>
    %cst_71 = arith.constant dense<0.000000e+00> : vector<32x128xf32>
    %301 = tpu.matmul %3, %300, %cst_71 {dimension_numbers = #tpu.dot_dimension_numbers<[1], [0], [0], [1], [0, 0, 1, 1], [], []>} : vector<32x32xf32>, vector<32x128xf32>, vector<32x128xf32> -> vector<32x128xf32>
    %302 = vector.extract_strided_slice %284 {offsets = [4, 0], sizes = [1, 128], strides = [1, 1]} : vector<8x128xf32> to vector<1x128xf32>
    %303 = vector.broadcast %302 : vector<1x128xf32> to vector<32x128xf32>
    %304 = arith.mulf %7, %303 : vector<32x128xf32>
    %305 = arith.addf %301, %304 : vector<32x128xf32>
    %306 = vector.extract_strided_slice %284 {offsets = [5, 0], sizes = [1, 128], strides = [1, 1]} : vector<8x128xf32> to vector<1x128xf32>
    %307 = vector.broadcast %306 : vector<1x128xf32> to vector<32x128xf32>
    %308 = arith.mulf %10, %307 : vector<32x128xf32>
    %309 = arith.addf %305, %308 : vector<32x128xf32>
    %310 = vector.extract_strided_slice %284 {offsets = [6, 0], sizes = [1, 128], strides = [1, 1]} : vector<8x128xf32> to vector<1x128xf32>
    %311 = vector.broadcast %310 : vector<1x128xf32> to vector<32x128xf32>
    %312 = arith.mulf %13, %311 : vector<32x128xf32>
    %313 = arith.addf %309, %312 : vector<32x128xf32>
    %314 = vector.extract_strided_slice %284 {offsets = [7, 0], sizes = [1, 128], strides = [1, 1]} : vector<8x128xf32> to vector<1x128xf32>
    %315 = vector.broadcast %314 : vector<1x128xf32> to vector<32x128xf32>
    %316 = arith.mulf %16, %315 : vector<32x128xf32>
    %317 = arith.addf %313, %316 : vector<32x128xf32>
    %c0_72 = arith.constant 0 : index
    %c0_73 = arith.constant 0 : index
    %318 = vector.load %arg7[%c0_72, %c0_73] : memref<32x128xf32, #tpu.memory_space<vmem>>, vector<32x128xf32>
    tpu.vector_store %arg7[%c0_72, %c0_73], %317 {strides = array<i32>} : memref<32x128xf32, #tpu.memory_space<vmem>>, vector<32x128xf32>,
    return
  }
  func.func @transform_0(%arg0: i32, %arg1: i32) -> (i32, i32, i32) {
    %c0_i32 = arith.constant 0 : i32
    %c0_i32_0 = arith.constant 0 : i32
    return %arg1, %c0_i32, %arg0 : i32, i32, i32
  }
  func.func @transform_1(%arg0: i32, %arg1: i32) -> (i32, i32) {
    %c0_i32 = arith.constant 0 : i32
    %c0_i32_0 = arith.constant 0 : i32
    %c0_i32_1 = arith.constant 0 : i32
    return %c0_i32, %c0_i32_0 : i32, i32
  }
  func.func @transform_2(%arg0: i32, %arg1: i32) -> (i32, i32) {
    %c0_i32 = arith.constant 0 : i32
    %c0_i32_0 = arith.constant 0 : i32
    %c0_i32_1 = arith.constant 0 : i32
    return %c0_i32, %c0_i32_0 : i32, i32
  }
  func.func @transform_3(%arg0: i32, %arg1: i32) -> (i32, i32) {
    %c0_i32 = arith.constant 0 : i32
    %c0_i32_0 = arith.constant 0 : i32
    %c0_i32_1 = arith.constant 0 : i32
    return %c0_i32, %c0_i32_0 : i32, i32
  }
  func.func @transform_4(%arg0: i32, %arg1: i32) -> (i32, i32, i32) {
    %c0_i32 = arith.constant 0 : i32
    %c0_i32_0 = arith.constant 0 : i32
    return %arg1, %c0_i32, %arg0 : i32, i32, i32
  }
}

</mosaic_0001>

<llo_original>
// kernel: tpu_custom_call.1
$region0: #{tpu_custom_call.1}
  #allocation0 [shape = 'u32[]', space=smem, size = 0x4, offset = 0x4, fixed_abs, tag = 'smem constant byte address 0x4 - core index']
  #allocation1 [shape = 'u32[144,128]{1,0:T(1,128)}', space=vmem, size = 0x12000, scoped, tag = 'internal scratch']
  #allocation2 [shape = 'f32[32,128]{1,0:T(8,128)}', space=vmem, size = 0x4000, scoped, tag = 'scratch operand']
  %s0 = inlined_call_operand.hbm [shape: f32[16,8,128], index: 0, kind: input, shape index: {}]
  %s1 = inlined_call_operand.vmem [shape: f32[32,32], index: 1, kind: input, shape index: {}]
  %s2 = inlined_call_operand.vmem [shape: f32[32,4], index: 2, kind: input, shape index: {}]
  %s3 = inlined_call_operand.vmem [shape: f32[32,1], index: 3, kind: input, shape index: {}]
  %s4 = inlined_call_operand.hbm [shape: f32[16,4,128], index: 4, kind: output, shape index: {}]
  %s5 = sld [smem:[#allocation0]]
  $region57: #{tpu_custom_call.1} parent=0
    _
  %s7 = ssub.s32 1, %s5
  %s8 = scalar_select 0, %s7, %s5
  $region1: #{tpu_custom_call.1} parent=0
    #allocation3 [shape = 'u8[65536]{0}', space=vmem, size = 0x10000, scoped, tag = 'input window, operand 0']
    #allocation4 [shape = 's32[2]{0}', space=sflag, size = 0x8, scoped, tag = 'scoped memory for tpu_custom_call.1']
    #allocation5 [shape = 's32[2]{0}', space=sflag, size = 0x8, scoped, tag = 'scoped memory for tpu_custom_call.1']
    #allocation6 [shape = 'u8[32768]{0}', space=vmem, size = 0x8000, scoped, tag = 'output window, operand 0']
    %9 = vsyncpa [#allocation4], 0
    %s10 = scalar_lea.sflag [#allocation4], 1
    %11 = vsyncpa %s10, 0
    %12 = vsyncpa [#allocation5], 0
    %s13 = scalar_lea.sflag [#allocation5], 1
    %14 = vsyncpa %s13, 0
    loop: start=0, step=1, limit=4
    $region2: #{tpu_custom_call.1} parent=1 // loop_pre_header
      _
    $region3: #{tpu_custom_call.1} parent=1 // loop_header
      %s16 = sphi 0, %s20
      %p17 = scmp.ge.s32.totalorder %s16, 4
      %s23 = sphi 0, %s35
      %s24 = sphi 0, %s31
      %s25 = sphi 0, %s23
      %s26 = sphi 0, %s24
      %s27 = sphi 0, %s25
      %s28 = sphi 0, %s26
      %s40 = sphi 0, %s42
      %s43 = sphi 0, %s40
      %s44 = sphi 0, %s43
      %s60 = sphi 0, %s44
      %s64 = sphi 0, %s64
      %s66 = sphi 0, %s64
      %s67 = sphi 0, %s66
      %s81 = sphi 0, %s67
      %s85 = sphi 0, %s85
      %s87 = sphi 0, %s85
      %s88 = sphi 0, %s87
      %s102 = sphi 0, %s88
      %s106 = sphi 0, %s106
      %s108 = sphi 0, %s106
      %s109 = sphi 0, %s108
      %s123 = sphi 0, %s109
      %s131 = sphi 0, %s133
      %s134 = sphi 0, %s131
      %s135 = sphi 0, %s134
      %s151 = sphi 0, %s135
    $region4: #{tpu_custom_call.1} parent=1 // loop_header_branch
      %19 = sbr.rel (%p17) target = $region8
    $region5: #{tpu_custom_call.1} parent=1 // loop_body
      %s21 = ssub.s32 %s16, 1
      %s22 = ssub.s32 %s16, 2
      %s29 = sadd.s32 1, %s24
      %p30 = scmp.ge.s32.totalorder %s29, 2
      %s31 = scalar_select %p30, 0, %s29
      %s32 = sadd.s32 1, %s23
      %s33 = scalar_select %p30, %s32, %s23
      %p34 = scmp.ge.s32.totalorder %s33, 1
      %s35 = scalar_select %p34, 0, %s33
      %s36 = ssub.s32 %s24, %s31
      %s37 = ssub.s32 %s23, %s35
      %s38 = sor.u32 %s36, %s37
      %p39 = scmp.eq.s32.totalorder %s38, 0
      %s41 = sadd.s32 %s40, 1
      %s42 = scalar_select %p39, %s40, %s41
      %p45 = pneg %p39
      %p46 = scmp.eq.s32.totalorder %s16, 1
      %p47 = por %p45, %p46
      %p48 = scmp.ne.s32.totalorder %s40, %s43
      %p49 = scmp.eq.s32.totalorder %s16, 0
      %p50 = por %p48, %p49
      %p51 = scmp.ne.s32.totalorder %s40, %s43
      %p52 = scmp.eq.s32.totalorder %s21, 1
      %p53 = por %p51, %p52
      %p54 = scmp.ne.s32.totalorder %s43, %s44
      %p55 = scmp.eq.s32.totalorder %s21, 0
      %p56 = por %p54, %p55
      %p57 = scmp.ne.s32.totalorder %s43, %s44
      %p58 = scmp.eq.s32.totalorder %s22, 1
      %p59 = por %p57, %p58
      %p61 = scmp.ne.s32.totalorder %s44, %s60
      %p62 = scmp.eq.s32.totalorder %s22, 0
      %p63 = por %p61, %p62
      %s65 = sadd.s32 %s64, 1
      %p68 = scmp.eq.s32.totalorder %s16, 1
      %p69 = scmp.ne.s32.totalorder %s64, %s66
      %p70 = scmp.eq.s32.totalorder %s16, 0
      %p71 = por %p69, %p70
      %p72 = scmp.ne.s32.totalorder %s64, %s66
      %p73 = scmp.eq.s32.totalorder %s21, 1
      %p74 = por %p72, %p73
      %p75 = scmp.ne.s32.totalorder %s66, %s67
      %p76 = scmp.eq.s32.totalorder %s21, 0
      %p77 = por %p75, %p76
      %p78 = scmp.ne.s32.totalorder %s66, %s67
      %p79 = scmp.eq.s32.totalorder %s22, 1
      %p80 = por %p78, %p79
      %p82 = scmp.ne.s32.totalorder %s67, %s81
      %p83 = scmp.eq.s32.totalorder %s22, 0
      %p84 = por %p82, %p83
      %s86 = sadd.s32 %s85, 1
      %p89 = scmp.eq.s32.totalorder %s16, 1
      %p90 = scmp.ne.s32.totalorder %s85, %s87
      %p91 = scmp.eq.s32.totalorder %s16, 0
      %p92 = por %p90, %p91
      %p93 = scmp.ne.s32.totalorder %s85, %s87
      %p94 = scmp.eq.s32.totalorder %s21, 1
      %p95 = por %p93, %p94
      %p96 = scmp.ne.s32.totalorder %s87, %s88
      %p97 = scmp.eq.s32.totalorder %s21, 0
      %p98 = por %p96, %p97
      %p99 = scmp.ne.s32.totalorder %s87, %s88
      %p100 = scmp.eq.s32.totalorder %s22, 1
      %p101 = por %p99, %p100
      %p103 = scmp.ne.s32.totalorder %s88, %s102
      %p104 = scmp.eq.s32.totalorder %s22, 0
      %p105 = por %p103, %p104
      %s107 = sadd.s32 %s106, 1
      %p110 = scmp.eq.s32.totalorder %s16, 1
      %p111 = scmp.ne.s32.totalorder %s106, %s108
      %p112 = scmp.eq.s32.totalorder %s16, 0
      %p113 = por %p111, %p112
      %p114 = scmp.ne.s32.totalorder %s106, %s108
      %p115 = scmp.eq.s32.totalorder %s21, 1
      %p116 = por %p114, %p115
      %p117 = scmp.ne.s32.totalorder %s108, %s109
      %p118 = scmp.eq.s32.totalorder %s21, 0
      %p119 = por %p117, %p118
      %p120 = scmp.ne.s32.totalorder %s108, %s109
      %p121 = scmp.eq.s32.totalorder %s22, 1
      %p122 = por %p120, %p121
      %p124 = scmp.ne.s32.totalorder %s109, %s123
      %p125 = scmp.eq.s32.totalorder %s22, 0
      %p126 = por %p124, %p125
      %s127 = ssub.s32 %s24, %s31
      %s128 = ssub.s32 %s23, %s35
      %s129 = sor.u32 %s127, %s128
      %p130 = scmp.eq.s32.totalorder %s129, 0
      %s132 = sadd.s32 %s131, 1
      %s133 = scalar_select %p130, %s131, %s132
      %p136 = pneg %p130
      %p137 = scmp.eq.s32.totalorder %s16, 1
      %p138 = por %p136, %p137
      %p139 = scmp.ne.s32.totalorder %s131, %s134
      %p140 = scmp.eq.s32.totalorder %s16, 0
      %p141 = por %p139, %p140
      %p142 = scmp.ne.s32.totalorder %s131, %s134
      %p143 = scmp.eq.s32.totalorder %s21, 1
      %p144 = por %p142, %p143
      %p145 = scmp.ne.s32.totalorder %s134, %s135
      %p146 = scmp.eq.s32.totalorder %s21, 0
      %p147 = por %p145, %p146
      %p148 = scmp.ne.s32.totalorder %s134, %s135
      %p149 = scmp.eq.s32.totalorder %s22, 1
      %p150 = por %p148, %p149
      %p152 = scmp.ne.s32.totalorder %s135, %s151
      %p153 = scmp.eq.s32.totalorder %s22, 0
      %p154 = por %p152, %p153
      %p155 = scmp.le.s32.totalorder 1, %s16
      %p156 = scmp.lt.s32.totalorder %s16, 3
      %p157 = pnand %p155, %p156
      %p158 = pneg %p157
      // Predicated region
      $region9: #{tpu_custom_call.1} parent=5 // pred_check
        _
      $region10: #{tpu_custom_call.1} parent=5 // pred_check_branch
        %160 = sbr.rel (%p157) target = $region12
      $region11: #{tpu_custom_call.1} parent=5 // pred_region
        %s161 = ssub.s32 %s16, 1
        // Predicated region
        $region13: #{tpu_custom_call.1} parent=11 // pred_check
          %p162 = pneg %p77
        $region14: #{tpu_custom_call.1} parent=11 // pred_check_branch
          %164 = sbr.rel (%p162) target = $region16
        $region15: #{tpu_custom_call.1} parent=11 // pred_region
          _
        $region16: #{tpu_custom_call.1} parent=11 // pred_fallthru
          _
        // Predicated region
        $region17: #{tpu_custom_call.1} parent=11 // pred_check
          %p165 = pneg %p98
        $region18: #{tpu_custom_call.1} parent=11 // pred_check_branch
          %167 = sbr.rel (%p165) target = $region20
        $region19: #{tpu_custom_call.1} parent=11 // pred_region
          _
        $region20: #{tpu_custom_call.1} parent=11 // pred_fallthru
          _
        // Predicated region
        $region21: #{tpu_custom_call.1} parent=11 // pred_check
          %p168 = pneg %p119
        $region22: #{tpu_custom_call.1} parent=11 // pred_check_branch
          %170 = sbr.rel (%p168) target = $region24
        $region23: #{tpu_custom_call.1} parent=11 // pred_region
          _
        $region24: #{tpu_custom_call.1} parent=11 // pred_fallthru
          _
      $region12: #{tpu_custom_call.1} parent=5 // pred_fallthru
        _
      %p171 = scmp.lt.s32.totalorder %s16, 2
      // Predicated region
      $region25: #{tpu_custom_call.1} parent=5 // pred_check
        %p172 = pneg %p171
      $region26: #{tpu_custom_call.1} parent=5 // pred_check_branch
        %174 = sbr.rel (%p172) target = $region28
      $region27: #{tpu_custom_call.1} parent=5 // pred_region
        // Predicated region
        $region29: #{tpu_custom_call.1} parent=27 // pred_check
          %p175 = pneg %p50
        $region30: #{tpu_custom_call.1} parent=27 // pred_check_branch
          %177 = sbr.rel (%p175) target = $region32
        $region31: #{tpu_custom_call.1} parent=27 // pred_region
          %s178 = sand.u32 %s40, 1
          %s179 = scalar_lea.sflag [#allocation4], %s178
          %s180 = sand.u32 %s40, 1
          %s181 = smul.addr %s180, 64
          %s182 = scalar_lea.vmem [#allocation3], %s181
          %s183 = smul.u32 8, %s24
          %s185 = ssub.s32 1024, 1024
          %186 = vsyncadd %s179, %s185
          %s187 = sadd.s32 %s23, %s183
          %s188 = smul.addr %s187, 128
          %s189 = scalar_lea.hbm %s0, %s188
          %s190 = sshll.u32 %s182, 4
          %s191 = int_to_ptr.vmem [resolvable:$true] %s190
          %196 = dma.hbm_to_vmem [thread:$0]  %s189, 1024, %s191, %s179, 128, 128, 8
        $region32: #{tpu_custom_call.1} parent=27 // pred_fallthru
          _
      $region28: #{tpu_custom_call.1} parent=5 // pred_fallthru
        _
      %p197 = scmp.le.s32.totalorder 1, %s16
      %p198 = scmp.lt.s32.totalorder %s16, 3
      %p199 = pnand %p197, %p198
      %p200 = pneg %p199
      // Predicated region
      $region33: #{tpu_custom_call.1} parent=5 // pred_check
        _
      $region34: #{tpu_custom_call.1} parent=5 // pred_check_branch
        %202 = sbr.rel (%p199) target = $region36
      $region35: #{tpu_custom_call.1} parent=5 // pred_region
        %s203 = ssub.s32 %s16, 1
        %s204 = sand.u32 %s43, 1
        %s205 = scalar_lea.sflag [#allocation4], %s204
        %s206 = sand.u32 %s43, 1
        %s207 = smul.addr %s206, 64
        %s208 = scalar_lea.vmem [#allocation3], %s207
        // Predicated region
        $region37: #{tpu_custom_call.1} parent=35 // pred_check
          %p209 = pneg %p56
        $region38: #{tpu_custom_call.1} parent=35 // pred_check_branch
          %211 = sbr.rel (%p209) target = $region40
        $region39: #{tpu_custom_call.1} parent=35 // pred_region
          %212 = dma.done %s205, 1024
        $region40: #{tpu_custom_call.1} parent=35 // pred_fallthru
          _
        %s213 = sand.u32 %s43, 1
        %s214 = scalar_lea.sflag [#allocation4], %s213
        %s215 = sand.u32 %s43, 1
        %s216 = smul.addr %s215, 64
        %s217 = scalar_lea.vmem [#allocation3], %s216
        %p218 = pneg %p56
        %p219 = pneg %p53
        %p220 = pneg %p77
        %p221 = pneg %p74
        %p222 = pneg %p98
        %p223 = pneg %p95
        %p224 = pneg %p119
        %p225 = pneg %p116
        %p226 = pneg %p147
        %p227 = pneg %p144
        %s228 = sand.u32 %s134, 1
        %s229 = scalar_lea.sflag [#allocation5], %s228
        %s230 = sand.u32 %s134, 1
        %s231 = smul.addr %s230, 32
        %s232 = scalar_lea.vmem [#allocation6], %s231
        %s233 = smul.u32 8, %s26
        %s234 = smul.u32 8, %s26
        %p235 = scmp.eq.s32.totalorder %s26, 0
        // Predicated region
        $region41: #{tpu_custom_call.1} parent=35 // pred_check
          %p236 = pneg %p235
        $region42: #{tpu_custom_call.1} parent=35 // pred_check_branch
          %238 = sbr.rel (%p236) target = $region44
        $region43: #{tpu_custom_call.1} parent=35 // pred_region
          %v239 = vld [vmem:[%s3] sm:$0xff]
          %v240 = vld [vmem:[%s3 + $0x8] sm:$0xff]
          %v241 = vld [vmem:[%s3 + $0x10] sm:$0xff]
          %v242 = vld [vmem:[%s3 + $0x18] sm:$0xff]
          %244 = vset.pattern.permute.xlu0 0
          %245 = vperm.xlu0 %244, %v239
          %v246 = vpop.permute.xlu0 %245
          %249 = vset.pattern.permute.xlu0 0
          %250 = vperm.xlu0 %249, %v240
          %v251 = vpop.permute.xlu0 %250
          %254 = vset.pattern.permute.xlu0 0
          %255 = vperm.xlu0 %254, %v241
          %v256 = vpop.permute.xlu0 %255
          %259 = vset.pattern.permute.xlu0 0
          %260 = vperm.xlu0 %259, %v242
          %v261 = vpop.permute.xlu0 %260
          %263 = vst [vmem:[#allocation2] sm:$0xff] %v246
          %264 = vst [vmem:[#allocation2 + $0x8] sm:$0xff] %v251
          %265 = vst [vmem:[#allocation2 + $0x10] sm:$0xff] %v256
          %266 = vst [vmem:[#allocation2 + $0x18] sm:$0xff] %v261
        $region44: #{tpu_custom_call.1} parent=35 // pred_fallthru
          _
        %v267 = vld [vmem:[%s1] sm:$0xff]
        %v268 = vld [vmem:[%s1 + $0x8] sm:$0xff]
        %v269 = vld [vmem:[%s1 + $0x10] sm:$0xff]
        %v270 = vld [vmem:[%s1 + $0x18] sm:$0xff]
        %v271 = vld [vmem:[%s2] sm:$0xff]
        %v272 = vld [vmem:[%s2 + $0x8] sm:$0xff]
        %v273 = vld [vmem:[%s2 + $0x10] sm:$0xff]
        %v274 = vld [vmem:[%s2 + $0x18] sm:$0xff]
        %276 = vset.pattern.permute.xlu0 0
        %277 = vperm.xlu0 %276, %v271
        %v278 = vpop.permute.xlu0 %277
        %281 = vset.pattern.permute.xlu0 0
        %282 = vperm.xlu0 %281, %v272
        %v283 = vpop.permute.xlu0 %282
        %286 = vset.pattern.permute.xlu0 0
        %287 = vperm.xlu0 %286, %v273
        %v288 = vpop.permute.xlu0 %287
        %291 = vset.pattern.permute.xlu0 0
        %292 = vperm.xlu0 %291, %v274
        %v293 = vpop.permute.xlu0 %292
        %295 = vset.pattern.permute.xlu0 1
        %296 = vperm.xlu0 %295, %v271
        %v297 = vpop.permute.xlu0 %296
        %299 = vset.pattern.permute.xlu0 1
        %300 = vperm.xlu0 %299, %v272
        %v301 = vpop.permute.xlu0 %300
        %303 = vset.pattern.permute.xlu0 1
        %304 = vperm.xlu0 %303, %v273
        %v305 = vpop.permute.xlu0 %304
        %307 = vset.pattern.permute.xlu0 1
        %308 = vperm.xlu0 %307, %v274
        %v309 = vpop.permute.xlu0 %308
        %311 = vset.pattern.permute.xlu0 2
        %312 = vperm.xlu0 %311, %v271
        %v313 = vpop.permute.xlu0 %312
        %315 = vset.pattern.permute.xlu0 2
        %316 = vperm.xlu0 %315, %v272
        %v317 = vpop.permute.xlu0 %316
        %319 = vset.pattern.permute.xlu0 2
        %320 = vperm.xlu0 %319, %v273
        %v321 = vpop.permute.xlu0 %320
        %323 = vset.pattern.permute.xlu0 2
        %324 = vperm.xlu0 %323, %v274
        %v325 = vpop.permute.xlu0 %324
        %327 = vset.pattern.permute.xlu0 3
        %328 = vperm.xlu0 %327, %v271
        %v329 = vpop.permute.xlu0 %328
        %331 = vset.pattern.permute.xlu0 3
        %332 = vperm.xlu0 %331, %v272
        %v333 = vpop.permute.xlu0 %332
        %335 = vset.pattern.permute.xlu0 3
        %336 = vperm.xlu0 %335, %v273
        %v337 = vpop.permute.xlu0 %336
        %339 = vset.pattern.permute.xlu0 3
        %340 = vperm.xlu0 %339, %v274
        %v341 = vpop.permute.xlu0 %340
        %v343 = vlaneseq
        %v344 = vshrl.u32 %v343, 7
        %vm345 = vcmp.lt.s32.totalorder %v344, 4
        %v346 = vld [vmem:[#allocation2] sm:$0xff]
        %v347 = vld [vmem:[#allocation2 + $0x8] sm:$0xff]
        %v348 = vld [vmem:[#allocation2 + $0x10] sm:$0xff]
        %v349 = vld [vmem:[#allocation2 + $0x18] sm:$0xff]
        %s350 = smul.u32 %s26, 8
        %p351 = scmp.lt.s32.totalorder %s350, 8
        %v352 = vld [vmem:[%s208] sm:$0xff]
        %s353 = scalar_select %p351, 1, 0
        %v354 = vstv %s353
        %vm355 = vcmp.eq.s32.totalorder %v354, 1
        %vm356 = vmand %vm355, %vm345
        %v357 = vsel %vm356, %v352, 0.0
        %v358 = vsub.f32 %v346, %v357
        %359 = vst [vmem:[%s232] sm:$0xf] %v358
        %v360 = vsel %vm356, %v352, %v346
        %v361 = vtanh.pop %v360
        %v362 = vtanh.pop %v347
        %v363 = vtanh.pop %v348
        %v364 = vtanh.pop %v349
        %v365 = vlaneseq
        %v366 = vshrl.u32 %v365, 7
        %v367 = vsub.s32 4, %v366
        %v368 = vrot.slane %v352, %v367
        %v369 = vmul.f32 %v278, %v368
        %v370 = vmul.f32 %v283, %v368
        %v371 = vmul.f32 %v288, %v368
        %v372 = vmul.f32 %v293, %v368
        %vm373 = vcmask 261120
        %v375 = vsel %vm373, %v267, 0
        %v378 = vsel %vm373, %v268, 0
        %v381 = vsel %vm373, %v269, 0
        %v384 = vsel %vm373, %v270, 0
        %386 = vmatprep.subr.mxu0 0.0
        %387 = vmatpush1.msra.mxu0 %v361
        %388 = vmatprep.subr.mxu0 0.0
        %389 = vmatpush1.msra.mxu0 %v362
        %390 = vmatprep.subr.mxu0 0.0
        %391 = vmatpush1.msra.mxu0 %v363
        %392 = vmatprep.subr.mxu0 0.0
        %393 = vmatpush1.msra.mxu0 %v364
        %394 = vmatprep.subr.mxu0 0.0
        %395 = vmatpush1.msra.mxu0 0.0
        %396 = vmatprep.subr.mxu0 0.0
        %397 = vmatpush1.msra.mxu0 0.0
        %398 = vmatprep.subr.mxu0 0.0
        %399 = vmatpush1.msra.mxu0 0.0
        %400 = vmatprep.subr.mxu0 0.0
        %401 = vmatpush1.msra.mxu0 0.0
        %402 = vmatprep.subr.mxu0 0.0
        %403 = vmatpush1.msra.mxu0 0.0
        %404 = vmatprep.subr.mxu0 0.0
        %405 = vmatpush1.msra.mxu0 0.0
        %406 = vmatprep.subr.mxu0 0.0
        %407 = vmatpush1.msra.mxu0 0.0
        %408 = vmatprep.subr.mxu0 0.0
        %409 = vmatpush1.msra.mxu0 0.0
        %410 = vmatprep.subr.mxu0 0.0
        %411 = vmatpush1.msra.mxu0 0.0
        %412 = vmatprep.subr.mxu0 0.0
        %413 = vmatpush1.msra.mxu0 0.0
        %414 = vmatprep.subr.mxu0 0.0
        %415 = vmatpush1.msra.mxu0 0.0
        %416 = vmatprep.subr.mxu0 0.0
        %417 = vmatpush1.msra.mxu0 0.0
        %418 = vmatprep.subr.mxu0 0.0
        %419 = vmatpush1.msra.mxu0 0.0
        %420 = vmatprep.subr.mxu0 0.0
        %421 = vmatpush1.msra.mxu0 0.0
        %422 = vmatprep.subr.mxu0 0.0
        %423 = vmatpush1.msra.mxu0 0.0
        %424 = vmatprep.subr.mxu0 0.0
        %425 = vmatpush1.msra.mxu0 0.0
        %426 = vmatprep.subr.mxu0 0.0
        %427 = vmatpush1.msra.mxu0 0.0
        %428 = vmatprep.subr.mxu0 0.0
        %429 = vmatpush1.msra.mxu0 0.0
        %430 = vmatprep.subr.mxu0 0.0
        %431 = vmatpush1.msra.mxu0 0.0
        %432 = vmatprep.subr.mxu0 0.0
        %433 = vmatpush1.msra.mxu0 0.0
        %434 = vmatprep.subr.mxu0 0.0
        %435 = vmatpush1.msra.mxu0 0.0
        %436 = vmatprep.subr.mxu0 0.0
        %437 = vmatpush1.msra.mxu0 0.0
        %438 = vmatprep.subr.mxu0 0.0
        %439 = vmatpush1.msra.mxu0 0.0
        %440 = vmatprep.subr.mxu0 0.0
        %441 = vmatpush1.msra.mxu0 0.0
        %442 = vmatprep.subr.mxu0 0.0
        %443 = vmatpush1.msra.mxu0 0.0
        %444 = vmatprep.subr.mxu0 0.0
        %445 = vmatpush1.msra.mxu0 0.0
        %446 = vmatprep.subr.mxu0 0.0
        %447 = vmatpush1.msra.mxu0 0.0
        %448 = vmatprep.subr.mxu0 0.0
        %449 = vmatpush1.msra.mxu0 0.0
        %450 = vmatprep.mubr.f32.mxu0 0.0
        %451 = vmatmul.mubr.f32.gmra.mrb[0].mxu0 %v375
        %v452 = vpop.f32.mrb[0].mxu0
        %v453 = vadd.f32 %v369, %v452
        %v454 = vpop.f32.mrb[0].mxu0
        %455 = vmatprep.mubr.f32.mxu0 0.0
        %456 = vmatmul.mubr.f32.gmra.mrb[0].mxu0 %v378
        %v457 = vpop.f32.mrb[0].mxu0
        %v458 = vadd.f32 %v370, %v457
        %v459 = vpop.f32.mrb[0].mxu0
        %460 = vmatprep.mubr.f32.mxu0 0.0
        %461 = vmatmul.mubr.f32.gmra.mrb[0].mxu0 %v381
        %v462 = vpop.f32.mrb[0].mxu0
        %v463 = vadd.f32 %v371, %v462
        %v464 = vpop.f32.mrb[0].mxu0
        %465 = vmatprep.mubr.f32.mxu0 0.0
        %466 = vmatmul.mubr.f32.gmra.mrb[0].mxu0 %v384
        %v467 = vpop.f32.mrb[0].mxu0
        %v468 = vadd.f32 %v372, %v467
        %v469 = vpop.f32.mrb[0].mxu0
        %470 = vdwg.mxu0
        %v471 = vlaneseq
        %v472 = vshrl.u32 %v471, 7
        %v473 = vsub.s32 5, %v472
        %v474 = vrot.slane %v352, %v473
        %v475 = vmul.f32 %v297, %v474
        %v476 = vmul.f32 %v301, %v474
        %v477 = vmul.f32 %v305, %v474
        %v478 = vmul.f32 %v309, %v474
        %v479 = vadd.f32 %v453, %v475
        %v480 = vadd.f32 %v458, %v476
        %v481 = vadd.f32 %v463, %v477
        %v482 = vadd.f32 %v468, %v478
        %v483 = vlaneseq
        %v484 = vshrl.u32 %v483, 7
        %v485 = vsub.s32 6, %v484
        %v486 = vrot.slane %v352, %v485
        %v487 = vmul.f32 %v313, %v486
        %v488 = vmul.f32 %v317, %v486
        %v489 = vmul.f32 %v321, %v486
        %v490 = vmul.f32 %v325, %v486
        %v491 = vadd.f32 %v479, %v487
        %v492 = vadd.f32 %v480, %v488
        %v493 = vadd.f32 %v481, %v489
        %v494 = vadd.f32 %v482, %v490
        %v495 = vlaneseq
        %v496 = vshrl.u32 %v495, 7
        %v497 = vsub.s32 7, %v496
        %v498 = vrot.slane %v352, %v497
        %v499 = vmul.f32 %v329, %v498
        %v500 = vmul.f32 %v333, %v498
        %v501 = vmul.f32 %v337, %v498
        %v502 = vmul.f32 %v341, %v498
        %v503 = vadd.f32 %v491, %v499
        %v504 = vadd.f32 %v492, %v500
        %v505 = vadd.f32 %v493, %v501
        %v506 = vadd.f32 %v494, %v502
        %s507 = sadd.s32 %s350, 1
        %p508 = scmp.lt.s32.totalorder %s507, 8
        %s509 = scalar_lea.vmem %s208, 8 [#allocation3]
        %v510 = vld [vmem:[%s509] sm:$0xff]
        %s511 = scalar_select %p508, 1, 0
        %v512 = vstv %s511
        %vm513 = vcmp.eq.s32.totalorder %v512, 1
        %vm514 = vmand %vm513, %vm345
        %v515 = vsel %vm514, %v510, 0.0
        %v516 = vsub.f32 %v503, %v515
        %s517 = scalar_lea.vmem %s232, 4 [#allocation6]
        %518 = vst [vmem:[%s517] sm:$0xf] %v516
        %v519 = vsel %vm514, %v510, %v503
        %v520 = vtanh.pop %v519
        %v521 = vtanh.pop %v504
        %v522 = vtanh.pop %v505
        %v523 = vtanh.pop %v506
        %v524 = vlaneseq
        %v525 = vshrl.u32 %v524, 7
        %v526 = vsub.s32 4, %v525
        %v527 = vrot.slane %v510, %v526
        %v528 = vmul.f32 %v278, %v527
        %v529 = vmul.f32 %v283, %v527
        %v530 = vmul.f32 %v288, %v527
        %v531 = vmul.f32 %v293, %v527
        %532 = vmatprep.subr.mxu0 0.0
        %533 = vmatpush1.msra.mxu0 %v520
        %534 = vmatprep.subr.mxu0 0.0
        %535 = vmatpush1.msra.mxu0 %v521
        %536 = vmatprep.subr.mxu0 0.0
        %537 = vmatpush1.msra.mxu0 %v522
        %538 = vmatprep.subr.mxu0 0.0
        %539 = vmatpush1.msra.mxu0 %v523
        %540 = vmatprep.subr.mxu0 0.0
        %541 = vmatpush1.msra.mxu0 0.0
        %542 = vmatprep.subr.mxu0 0.0
        %543 = vmatpush1.msra.mxu0 0.0
        %544 = vmatprep.subr.mxu0 0.0
        %545 = vmatpush1.msra.mxu0 0.0
        %546 = vmatprep.subr.mxu0 0.0
        %547 = vmatpush1.msra.mxu0 0.0
        %548 = vmatprep.subr.mxu0 0.0
        %549 = vmatpush1.msra.mxu0 0.0
        %550 = vmatprep.subr.mxu0 0.0
        %551 = vmatpush1.msra.mxu0 0.0
        %552 = vmatprep.subr.mxu0 0.0
        %553 = vmatpush1.msra.mxu0 0.0
        %554 = vmatprep.subr.mxu0 0.0
        %555 = vmatpush1.msra.mxu0 0.0
        %556 = vmatprep.subr.mxu0 0.0
        %557 = vmatpush1.msra.mxu0 0.0
        %558 = vmatprep.subr.mxu0 0.0
        %559 = vmatpush1.msra.mxu0 0.0
        %560 = vmatprep.subr.mxu0 0.0
        %561 = vmatpush1.msra.mxu0 0.0
        %562 = vmatprep.subr.mxu0 0.0
        %563 = vmatpush1.msra.mxu0 0.0
        %564 = vmatprep.subr.mxu0 0.0
        %565 = vmatpush1.msra.mxu0 0.0
        %566 = vmatprep.subr.mxu0 0.0
        %567 = vmatpush1.msra.mxu0 0.0
        %568 = vmatprep.subr.mxu0 0.0
        %569 = vmatpush1.msra.mxu0 0.0
        %570 = vmatprep.subr.mxu0 0.0
        %571 = vmatpush1.msra.mxu0 0.0
        %572 = vmatprep.subr.mxu0 0.0
        %573 = vmatpush1.msra.mxu0 0.0
        %574 = vmatprep.subr.mxu0 0.0
        %575 = vmatpush1.msra.mxu0 0.0
        %576 = vmatprep.subr.mxu0 0.0
        %577 = vmatpush1.msra.mxu0 0.0
        %578 = vmatprep.subr.mxu0 0.0
        %579 = vmatpush1.msra.mxu0 0.0
        %580 = vmatprep.subr.mxu0 0.0
        %581 = vmatpush1.msra.mxu0 0.0
        %582 = vmatprep.subr.mxu0 0.0
        %583 = vmatpush1.msra.mxu0 0.0
        %584 = vmatprep.subr.mxu0 0.0
        %585 = vmatpush1.msra.mxu0 0.0
        %586 = vmatprep.subr.mxu0 0.0
        %587 = vmatpush1.msra.mxu0 0.0
        %588 = vmatprep.subr.mxu0 0.0
        %589 = vmatpush1.msra.mxu0 0.0
        %590 = vmatprep.subr.mxu0 0.0
        %591 = vmatpush1.msra.mxu0 0.0
        %592 = vmatprep.subr.mxu0 0.0
        %593 = vmatpush1.msra.mxu0 0.0
        %594 = vmatprep.subr.mxu0 0.0
        %595 = vmatpush1.msra.mxu0 0.0
        %596 = vmatprep.mubr.f32.mxu0 0.0
        %597 = vmatmul.mubr.f32.gmra.mrb[0].mxu0 %v375
        %v598 = vpop.f32.mrb[0].mxu0
        %v599 = vadd.f32 %v528, %v598
        %v600 = vpop.f32.mrb[0].mxu0
        %601 = vmatprep.mubr.f32.mxu0 0.0
        %602 = vmatmul.mubr.f32.gmra.mrb[0].mxu0 %v378
        %v603 = vpop.f32.mrb[0].mxu0
        %v604 = vadd.f32 %v529, %v603
        %v605 = vpop.f32.mrb[0].mxu0
        %606 = vmatprep.mubr.f32.mxu0 0.0
        %607 = vmatmul.mubr.f32.gmra.mrb[0].mxu0 %v381
        %v608 = vpop.f32.mrb[0].mxu0
        %v609 = vadd.f32 %v530, %v608
        %v610 = vpop.f32.mrb[0].mxu0
        %611 = vmatprep.mubr.f32.mxu0 0.0
        %612 = vmatmul.mubr.f32.gmra.mrb[0].mxu0 %v384
        %v613 = vpop.f32.mrb[0].mxu0
        %v614 = vadd.f32 %v531, %v613
        %v615 = vpop.f32.mrb[0].mxu0
        %616 = vdwg.mxu0
        %v617 = vlaneseq
        %v618 = vshrl.u32 %v617, 7
        %v619 = vsub.s32 5, %v618
        %v620 = vrot.slane %v510, %v619
        %v621 = vmul.f32 %v297, %v620
        %v622 = vmul.f32 %v301, %v620
        %v623 = vmul.f32 %v305, %v620
        %v624 = vmul.f32 %v309, %v620
        %v625 = vadd.f32 %v599, %v621
        %v626 = vadd.f32 %v604, %v622
        %v627 = vadd.f32 %v609, %v623
        %v628 = vadd.f32 %v614, %v624
        %v629 = vlaneseq
        %v630 = vshrl.u32 %v629, 7
        %v631 = vsub.s32 6, %v630
        %v632 = vrot.slane %v510, %v631
        %v633 = vmul.f32 %v313, %v632
        %v634 = vmul.f32 %v317, %v632
        %v635 = vmul.f32 %v321, %v632
        %v636 = vmul.f32 %v325, %v632
        %v637 = vadd.f32 %v625, %v633
        %v638 = vadd.f32 %v626, %v634
        %v639 = vadd.f32 %v627, %v635
        %v640 = vadd.f32 %v628, %v636
        %v641 = vlaneseq
        %v642 = vshrl.u32 %v641, 7
        %v643 = vsub.s32 7, %v642
        %v644 = vrot.slane %v510, %v643
        %v645 = vmul.f32 %v329, %v644
        %v646 = vmul.f32 %v333, %v644
        %v647 = vmul.f32 %v337, %v644
        %v648 = vmul.f32 %v341, %v644
        %v649 = vadd.f32 %v637, %v645
        %v650 = vadd.f32 %v638, %v646
        %v651 = vadd.f32 %v639, %v647
        %v652 = vadd.f32 %v640, %v648
        %s653 = sadd.s32 %s350, 2
        %p654 = scmp.lt.s32.totalorder %s653, 8
        %s655 = scalar_lea.vmem %s208, 16 [#allocation3]
        %v656 = vld [vmem:[%s655] sm:$0xff]
        %s657 = scalar_select %p654, 1, 0
        %v658 = vstv %s657
        %vm659 = vcmp.eq.s32.totalorder %v658, 1
        %vm660 = vmand %vm659, %vm345
        %v661 = vsel %vm660, %v656, 0.0
        %v662 = vsub.f32 %v649, %v661
        %s663 = scalar_lea.vmem %s232, 8 [#allocation6]
        %664 = vst [vmem:[%s663] sm:$0xf] %v662
        %v665 = vsel %vm660, %v656, %v649
        %v666 = vtanh.pop %v665
        %v667 = vtanh.pop %v650
        %v668 = vtanh.pop %v651
        %v669 = vtanh.pop %v652
        %v670 = vlaneseq
        %v671 = vshrl.u32 %v670, 7
        %v672 = vsub.s32 4, %v671
        %v673 = vrot.slane %v656, %v672
        %v674 = vmul.f32 %v278, %v673
        %v675 = vmul.f32 %v283, %v673
        %v676 = vmul.f32 %v288, %v673
        %v677 = vmul.f32 %v293, %v673
        %678 = vmatprep.subr.mxu0 0.0
        %679 = vmatpush1.msra.mxu0 %v666
        %680 = vmatprep.subr.mxu0 0.0
        %681 = vmatpush1.msra.mxu0 %v667
        %682 = vmatprep.subr.mxu0 0.0
        %683 = vmatpush1.msra.mxu0 %v668
        %684 = vmatprep.subr.mxu0 0.0
        %685 = vmatpush1.msra.mxu0 %v669
        %686 = vmatprep.subr.mxu0 0.0
        %687 = vmatpush1.msra.mxu0 0.0
        %688 = vmatprep.subr.mxu0 0.0
        %689 = vmatpush1.msra.mxu0 0.0
        %690 = vmatprep.subr.mxu0 0.0
        %691 = vmatpush1.msra.mxu0 0.0
        %692 = vmatprep.subr.mxu0 0.0
        %693 = vmatpush1.msra.mxu0 0.0
        %694 = vmatprep.subr.mxu0 0.0
        %695 = vmatpush1.msra.mxu0 0.0
        %696 = vmatprep.subr.mxu0 0.0
        %697 = vmatpush1.msra.mxu0 0.0
        %698 = vmatprep.subr.mxu0 0.0
        %699 = vmatpush1.msra.mxu0 0.0
        %700 = vmatprep.subr.mxu0 0.0
        %701 = vmatpush1.msra.mxu0 0.0
        %702 = vmatprep.subr.mxu0 0.0
        %703 = vmatpush1.msra.mxu0 0.0
        %704 = vmatprep.subr.mxu0 0.0
        %705 = vmatpush1.msra.mxu0 0.0
        %706 = vmatprep.subr.mxu0 0.0
        %707 = vmatpush1.msra.mxu0 0.0
        %708 = vmatprep.subr.mxu0 0.0
        %709 = vmatpush1.msra.mxu0 0.0
        %710 = vmatprep.subr.mxu0 0.0
        %711 = vmatpush1.msra.mxu0 0.0
        %712 = vmatprep.subr.mxu0 0.0
        %713 = vmatpush1.msra.mxu0 0.0
        %714 = vmatprep.subr.mxu0 0.0
        %715 = vmatpush1.msra.mxu0 0.0
        %716 = vmatprep.subr.mxu0 0.0
        %717 = vmatpush1.msra.mxu0 0.0
        %718 = vmatprep.subr.mxu0 0.0
        %719 = vmatpush1.msra.mxu0 0.0
        %720 = vmatprep.subr.mxu0 0.0
        %721 = vmatpush1.msra.mxu0 0.0
        %722 = vmatprep.subr.mxu0 0.0
        %723 = vmatpush1.msra.mxu0 0.0
        %724 = vmatprep.subr.mxu0 0.0
        %725 = vmatpush1.msra.mxu0 0.0
        %726 = vmatprep.subr.mxu0 0.0
        %727 = vmatpush1.msra.mxu0 0.0
        %728 = vmatprep.subr.mxu0 0.0
        %729 = vmatpush1.msra.mxu0 0.0
        %730 = vmatprep.subr.mxu0 0.0
        %731 = vmatpush1.msra.mxu0 0.0
        %732 = vmatprep.subr.mxu0 0.0
        %733 = vmatpush1.msra.mxu0 0.0
        %734 = vmatprep.subr.mxu0 0.0
        %735 = vmatpush1.msra.mxu0 0.0
        %736 = vmatprep.subr.mxu0 0.0
        %737 = vmatpush1.msra.mxu0 0.0
        %738 = vmatprep.subr.mxu0 0.0
        %739 = vmatpush1.msra.mxu0 0.0
        %740 = vmatprep.subr.mxu0 0.0
        %741 = vmatpush1.msra.mxu0 0.0
        %742 = vmatprep.mubr.f32.mxu0 0.0
        %743 = vmatmul.mubr.f32.gmra.mrb[0].mxu0 %v375
        %v744 = vpop.f32.mrb[0].mxu0
        %v745 = vadd.f32 %v674, %v744
        %v746 = vpop.f32.mrb[0].mxu0
        %747 = vmatprep.mubr.f32.mxu0 0.0
        %748 = vmatmul.mubr.f32.gmra.mrb[0].mxu0 %v378
        %v749 = vpop.f32.mrb[0].mxu0
        %v750 = vadd.f32 %v675, %v749
        %v751 = vpop.f32.mrb[0].mxu0
        %752 = vmatprep.mubr.f32.mxu0 0.0
        %753 = vmatmul.mubr.f32.gmra.mrb[0].mxu0 %v381
        %v754 = vpop.f32.mrb[0].mxu0
        %v755 = vadd.f32 %v676, %v754
        %v756 = vpop.f32.mrb[0].mxu0
        %757 = vmatprep.mubr.f32.mxu0 0.0
        %758 = vmatmul.mubr.f32.gmra.mrb[0].mxu0 %v384
        %v759 = vpop.f32.mrb[0].mxu0
        %v760 = vadd.f32 %v677, %v759
        %v761 = vpop.f32.mrb[0].mxu0
        %762 = vdwg.mxu0
        %v763 = vlaneseq
        %v764 = vshrl.u32 %v763, 7
        %v765 = vsub.s32 5, %v764
        %v766 = vrot.slane %v656, %v765
        %v767 = vmul.f32 %v297, %v766
        %v768 = vmul.f32 %v301, %v766
        %v769 = vmul.f32 %v305, %v766
        %v770 = vmul.f32 %v309, %v766
        %v771 = vadd.f32 %v745, %v767
        %v772 = vadd.f32 %v750, %v768
        %v773 = vadd.f32 %v755, %v769
        %v774 = vadd.f32 %v760, %v770
        %v775 = vlaneseq
        %v776 = vshrl.u32 %v775, 7
        %v777 = vsub.s32 6, %v776
        %v778 = vrot.slane %v656, %v777
        %v779 = vmul.f32 %v313, %v778
        %v780 = vmul.f32 %v317, %v778
        %v781 = vmul.f32 %v321, %v778
        %v782 = vmul.f32 %v325, %v778
        %v783 = vadd.f32 %v771, %v779
        %v784 = vadd.f32 %v772, %v780
        %v785 = vadd.f32 %v773, %v781
        %v786 = vadd.f32 %v774, %v782
        %v787 = vlaneseq
        %v788 = vshrl.u32 %v787, 7
        %v789 = vsub.s32 7, %v788
        %v790 = vrot.slane %v656, %v789
        %v791 = vmul.f32 %v329, %v790
        %v792 = vmul.f32 %v333, %v790
        %v793 = vmul.f32 %v337, %v790
        %v794 = vmul.f32 %v341, %v790
        %v795 = vadd.f32 %v783, %v791
        %v796 = vadd.f32 %v784, %v792
        %v797 = vadd.f32 %v785, %v793
        %v798 = vadd.f32 %v786, %v794
        %s799 = sadd.s32 %s350, 3
        %p800 = scmp.lt.s32.totalorder %s799, 8
        %s801 = scalar_lea.vmem %s208, 24 [#allocation3]
        %v802 = vld [vmem:[%s801] sm:$0xff]
        %s803 = scalar_select %p800, 1, 0
        %v804 = vstv %s803
        %vm805 = vcmp.eq.s32.totalorder %v804, 1
        %vm806 = vmand %vm805, %vm345
        %v807 = vsel %vm806, %v802, 0.0
        %v808 = vsub.f32 %v795, %v807
        %s809 = scalar_lea.vmem %s232, 12 [#allocation6]
        %810 = vst [vmem:[%s809] sm:$0xf] %v808
        %v811 = vsel %vm806, %v802, %v795
        %v812 = vtanh.pop %v811
        %v813 = vtanh.pop %v796
        %v814 = vtanh.pop %v797
        %v815 = vtanh.pop %v798
        %v816 = vlaneseq
        %v817 = vshrl.u32 %v816, 7
        %v818 = vsub.s32 4, %v817
        %v819 = vrot.slane %v802, %v818
        %v820 = vmul.f32 %v278, %v819
        %v821 = vmul.f32 %v283, %v819
        %v822 = vmul.f32 %v288, %v819
        %v823 = vmul.f32 %v293, %v819
        %824 = vmatprep.subr.mxu0 0.0
        %825 = vmatpush1.msra.mxu0 %v812
        %826 = vmatprep.subr.mxu0 0.0
        %827 = vmatpush1.msra.mxu0 %v813
        %828 = vmatprep.subr.mxu0 0.0
        %829 = vmatpush1.msra.mxu0 %v814
        %830 = vmatprep.subr.mxu0 0.0
        %831 = vmatpush1.msra.mxu0 %v815
        %832 = vmatprep.subr.mxu0 0.0
        %833 = vmatpush1.msra.mxu0 0.0
        %834 = vmatprep.subr.mxu0 0.0
        %835 = vmatpush1.msra.mxu0 0.0
        %836 = vmatprep.subr.mxu0 0.0
        %837 = vmatpush1.msra.mxu0 0.0
        %838 = vmatprep.subr.mxu0 0.0
        %839 = vmatpush1.msra.mxu0 0.0
        %840 = vmatprep.subr.mxu0 0.0
        %841 = vmatpush1.msra.mxu0 0.0
        %842 = vmatprep.subr.mxu0 0.0
        %843 = vmatpush1.msra.mxu0 0.0
        %844 = vmatprep.subr.mxu0 0.0
        %845 = vmatpush1.msra.mxu0 0.0
        %846 = vmatprep.subr.mxu0 0.0
        %847 = vmatpush1.msra.mxu0 0.0
        %848 = vmatprep.subr.mxu0 0.0
        %849 = vmatpush1.msra.mxu0 0.0
        %850 = vmatprep.subr.mxu0 0.0
        %851 = vmatpush1.msra.mxu0 0.0
        %852 = vmatprep.subr.mxu0 0.0
        %853 = vmatpush1.msra.mxu0 0.0
        %854 = vmatprep.subr.mxu0 0.0
        %855 = vmatpush1.msra.mxu0 0.0
        %856 = vmatprep.subr.mxu0 0.0
        %857 = vmatpush1.msra.mxu0 0.0
        %858 = vmatprep.subr.mxu0 0.0
        %859 = vmatpush1.msra.mxu0 0.0
        %860 = vmatprep.subr.mxu0 0.0
        %861 = vmatpush1.msra.mxu0 0.0
        %862 = vmatprep.subr.mxu0 0.0
        %863 = vmatpush1.msra.mxu0 0.0
        %864 = vmatprep.subr.mxu0 0.0
        %865 = vmatpush1.msra.mxu0 0.0
        %866 = vmatprep.subr.mxu0 0.0
        %867 = vmatpush1.msra.mxu0 0.0
        %868 = vmatprep.subr.mxu0 0.0
        %869 = vmatpush1.msra.mxu0 0.0
        %870 = vmatprep.subr.mxu0 0.0
        %871 = vmatpush1.msra.mxu0 0.0
        %872 = vmatprep.subr.mxu0 0.0
        %873 = vmatpush1.msra.mxu0 0.0
        %874 = vmatprep.subr.mxu0 0.0
        %875 = vmatpush1.msra.mxu0 0.0
        %876 = vmatprep.subr.mxu0 0.0
        %877 = vmatpush1.msra.mxu0 0.0
        %878 = vmatprep.subr.mxu0 0.0
        %879 = vmatpush1.msra.mxu0 0.0
        %880 = vmatprep.subr.mxu0 0.0
        %881 = vmatpush1.msra.mxu0 0.0
        %882 = vmatprep.subr.mxu0 0.0
        %883 = vmatpush1.msra.mxu0 0.0
        %884 = vmatprep.subr.mxu0 0.0
        %885 = vmatpush1.msra.mxu0 0.0
        %886 = vmatprep.subr.mxu0 0.0
        %887 = vmatpush1.msra.mxu0 0.0
        %888 = vmatprep.mubr.f32.mxu0 0.0
        %889 = vmatmul.mubr.f32.gmra.mrb[0].mxu0 %v375
        %v890 = vpop.f32.mrb[0].mxu0
        %v891 = vadd.f32 %v820, %v890
        %v892 = vpop.f32.mrb[0].mxu0
        %893 = vmatprep.mubr.f32.mxu0 0.0
        %894 = vmatmul.mubr.f32.gmra.mrb[0].mxu0 %v378
        %v895 = vpop.f32.mrb[0].mxu0
        %v896 = vadd.f32 %v821, %v895
        %v897 = vpop.f32.mrb[0].mxu0
        %898 = vmatprep.mubr.f32.mxu0 0.0
        %899 = vmatmul.mubr.f32.gmra.mrb[0].mxu0 %v381
        %v900 = vpop.f32.mrb[0].mxu0
        %v901 = vadd.f32 %v822, %v900
        %v902 = vpop.f32.mrb[0].mxu0
        %903 = vmatprep.mubr.f32.mxu0 0.0
        %904 = vmatmul.mubr.f32.gmra.mrb[0].mxu0 %v384
        %v905 = vpop.f32.mrb[0].mxu0
        %v906 = vadd.f32 %v823, %v905
        %v907 = vpop.f32.mrb[0].mxu0
        %908 = vdwg.mxu0
        %v909 = vlaneseq
        %v910 = vshrl.u32 %v909, 7
        %v911 = vsub.s32 5, %v910
        %v912 = vrot.slane %v802, %v911
        %v913 = vmul.f32 %v297, %v912
        %v914 = vmul.f32 %v301, %v912
        %v915 = vmul.f32 %v305, %v912
        %v916 = vmul.f32 %v309, %v912
        %v917 = vadd.f32 %v891, %v913
        %v918 = vadd.f32 %v896, %v914
        %v919 = vadd.f32 %v901, %v915
        %v920 = vadd.f32 %v906, %v916
        %v921 = vlaneseq
        %v922 = vshrl.u32 %v921, 7
        %v923 = vsub.s32 6, %v922
        %v924 = vrot.slane %v802, %v923
        %v925 = vmul.f32 %v313, %v924
        %v926 = vmul.f32 %v317, %v924
        %v927 = vmul.f32 %v321, %v924
        %v928 = vmul.f32 %v325, %v924
        %v929 = vadd.f32 %v917, %v925
        %v930 = vadd.f32 %v918, %v926
        %v931 = vadd.f32 %v919, %v927
        %v932 = vadd.f32 %v920, %v928
        %v933 = vlaneseq
        %v934 = vshrl.u32 %v933, 7
        %v935 = vsub.s32 7, %v934
        %v936 = vrot.slane %v802, %v935
        %v937 = vmul.f32 %v329, %v936
        %v938 = vmul.f32 %v333, %v936
        %v939 = vmul.f32 %v337, %v936
        %v940 = vmul.f32 %v341, %v936
        %v941 = vadd.f32 %v929, %v937
        %v942 = vadd.f32 %v930, %v938
        %v943 = vadd.f32 %v931, %v939
        %v944 = vadd.f32 %v932, %v940
        %s945 = sadd.s32 %s350, 4
        %p946 = scmp.lt.s32.totalorder %s945, 8
        %s947 = scalar_lea.vmem %s208, 32 [#allocation3]
        %v948 = vld [vmem:[%s947] sm:$0xff]
        %s949 = scalar_select %p946, 1, 0
        %v950 = vstv %s949
        %vm951 = vcmp.eq.s32.totalorder %v950, 1
        %vm952 = vmand %vm951, %vm345
        %v953 = vsel %vm952, %v948, 0.0
        %v954 = vsub.f32 %v941, %v953
        %s955 = scalar_lea.vmem %s232, 16 [#allocation6]
        %956 = vst [vmem:[%s955] sm:$0xf] %v954
        %v957 = vsel %vm952, %v948, %v941
        %v958 = vtanh.pop %v957
        %v959 = vtanh.pop %v942
        %v960 = vtanh.pop %v943
        %v961 = vtanh.pop %v944
        %v962 = vlaneseq
        %v963 = vshrl.u32 %v962, 7
        %v964 = vsub.s32 4, %v963
        %v965 = vrot.slane %v948, %v964
        %v966 = vmul.f32 %v278, %v965
        %v967 = vmul.f32 %v283, %v965
        %v968 = vmul.f32 %v288, %v965
        %v969 = vmul.f32 %v293, %v965
        %970 = vmatprep.subr.mxu0 0.0
        %971 = vmatpush1.msra.mxu0 %v958
        %972 = vmatprep.subr.mxu0 0.0
        %973 = vmatpush1.msra.mxu0 %v959
        %974 = vmatprep.subr.mxu0 0.0
        %975 = vmatpush1.msra.mxu0 %v960
        %976 = vmatprep.subr.mxu0 0.0
        %977 = vmatpush1.msra.mxu0 %v961
        %978 = vmatprep.subr.mxu0 0.0
        %979 = vmatpush1.msra.mxu0 0.0
        %980 = vmatprep.subr.mxu0 0.0
        %981 = vmatpush1.msra.mxu0 0.0
        %982 = vmatprep.subr.mxu0 0.0
        %983 = vmatpush1.msra.mxu0 0.0
        %984 = vmatprep.subr.mxu0 0.0
        %985 = vmatpush1.msra.mxu0 0.0
        %986 = vmatprep.subr.mxu0 0.0
        %987 = vmatpush1.msra.mxu0 0.0
        %988 = vmatprep.subr.mxu0 0.0
        %989 = vmatpush1.msra.mxu0 0.0
        %990 = vmatprep.subr.mxu0 0.0
        %991 = vmatpush1.msra.mxu0 0.0
        %992 = vmatprep.subr.mxu0 0.0
        %993 = vmatpush1.msra.mxu0 0.0
        %994 = vmatprep.subr.mxu0 0.0
        %995 = vmatpush1.msra.mxu0 0.0
        %996 = vmatprep.subr.mxu0 0.0
        %997 = vmatpush1.msra.mxu0 0.0
        %998 = vmatprep.subr.mxu0 0.0
        %999 = vmatpush1.msra.mxu0 0.0
        %1000 = vmatprep.subr.mxu0 0.0
        %1001 = vmatpush1.msra.mxu0 0.0
        %1002 = vmatprep.subr.mxu0 0.0
        %1003 = vmatpush1.msra.mxu0 0.0
        %1004 = vmatprep.subr.mxu0 0.0
        %1005 = vmatpush1.msra.mxu0 0.0
        %1006 = vmatprep.subr.mxu0 0.0
        %1007 = vmatpush1.msra.mxu0 0.0
        %1008 = vmatprep.subr.mxu0 0.0
        %1009 = vmatpush1.msra.mxu0 0.0
        %1010 = vmatprep.subr.mxu0 0.0
        %1011 = vmatpush1.msra.mxu0 0.0
        %1012 = vmatprep.subr.mxu0 0.0
        %1013 = vmatpush1.msra.mxu0 0.0
        %1014 = vmatprep.subr.mxu0 0.0
        %1015 = vmatpush1.msra.mxu0 0.0
        %1016 = vmatprep.subr.mxu0 0.0
        %1017 = vmatpush1.msra.mxu0 0.0
        %1018 = vmatprep.subr.mxu0 0.0
        %1019 = vmatpush1.msra.mxu0 0.0
        %1020 = vmatprep.subr.mxu0 0.0
        %1021 = vmatpush1.msra.mxu0 0.0
        %1022 = vmatprep.subr.mxu0 0.0
        %1023 = vmatpush1.msra.mxu0 0.0
        %1024 = vmatprep.subr.mxu0 0.0
        %1025 = vmatpush1.msra.mxu0 0.0
        %1026 = vmatprep.subr.mxu0 0.0
        %1027 = vmatpush1.msra.mxu0 0.0
        %1028 = vmatprep.subr.mxu0 0.0
        %1029 = vmatpush1.msra.mxu0 0.0
        %1030 = vmatprep.subr.mxu0 0.0
        %1031 = vmatpush1.msra.mxu0 0.0
        %1032 = vmatprep.subr.mxu0 0.0
        %1033 = vmatpush1.msra.mxu0 0.0
        %1034 = vmatprep.mubr.f32.mxu0 0.0
        %1035 = vmatmul.mubr.f32.gmra.mrb[0].mxu0 %v375
        %v1036 = vpop.f32.mrb[0].mxu0
        %v1037 = vadd.f32 %v966, %v1036
        %v1038 = vpop.f32.mrb[0].mxu0
        %1039 = vmatprep.mubr.f32.mxu0 0.0
        %1040 = vmatmul.mubr.f32.gmra.mrb[0].mxu0 %v378
        %v1041 = vpop.f32.mrb[0].mxu0
        %v1042 = vadd.f32 %v967, %v1041
        %v1043 = vpop.f32.mrb[0].mxu0
        %1044 = vmatprep.mubr.f32.mxu0 0.0
        %1045 = vmatmul.mubr.f32.gmra.mrb[0].mxu0 %v381
        %v1046 = vpop.f32.mrb[0].mxu0
        %v1047 = vadd.f32 %v968, %v1046
        %v1048 = vpop.f32.mrb[0].mxu0
        %1049 = vmatprep.mubr.f32.mxu0 0.0
        %1050 = vmatmul.mubr.f32.gmra.mrb[0].mxu0 %v384
        %v1051 = vpop.f32.mrb[0].mxu0
        %v1052 = vadd.f32 %v969, %v1051
        %v1053 = vpop.f32.mrb[0].mxu0
        %1054 = vdwg.mxu0
        %v1055 = vlaneseq
        %v1056 = vshrl.u32 %v1055, 7
        %v1057 = vsub.s32 5, %v1056
        %v1058 = vrot.slane %v948, %v1057
        %v1059 = vmul.f32 %v297, %v1058
        %v1060 = vmul.f32 %v301, %v1058
        %v1061 = vmul.f32 %v305, %v1058
        %v1062 = vmul.f32 %v309, %v1058
        %v1063 = vadd.f32 %v1037, %v1059
        %v1064 = vadd.f32 %v1042, %v1060
        %v1065 = vadd.f32 %v1047, %v1061
        %v1066 = vadd.f32 %v1052, %v1062
        %v1067 = vlaneseq
        %v1068 = vshrl.u32 %v1067, 7
        %v1069 = vsub.s32 6, %v1068
        %v1070 = vrot.slane %v948, %v1069
        %v1071 = vmul.f32 %v313, %v1070
        %v1072 = vmul.f32 %v317, %v1070
        %v1073 = vmul.f32 %v321, %v1070
        %v1074 = vmul.f32 %v325, %v1070
        %v1075 = vadd.f32 %v1063, %v1071
        %v1076 = vadd.f32 %v1064, %v1072
        %v1077 = vadd.f32 %v1065, %v1073
        %v1078 = vadd.f32 %v1066, %v1074
        %v1079 = vlaneseq
        %v1080 = vshrl.u32 %v1079, 7
        %v1081 = vsub.s32 7, %v1080
        %v1082 = vrot.slane %v948, %v1081
        %v1083 = vmul.f32 %v329, %v1082
        %v1084 = vmul.f32 %v333, %v1082
        %v1085 = vmul.f32 %v337, %v1082
        %v1086 = vmul.f32 %v341, %v1082
        %v1087 = vadd.f32 %v1075, %v1083
        %v1088 = vadd.f32 %v1076, %v1084
        %v1089 = vadd.f32 %v1077, %v1085
        %v1090 = vadd.f32 %v1078, %v1086
        %s1091 = sadd.s32 %s350, 5
        %p1092 = scmp.lt.s32.totalorder %s1091, 8
        %s1093 = scalar_lea.vmem %s208, 40 [#allocation3]
        %v1094 = vld [vmem:[%s1093] sm:$0xff]
        %s1095 = scalar_select %p1092, 1, 0
        %v1096 = vstv %s1095
        %vm1097 = vcmp.eq.s32.totalorder %v1096, 1
        %vm1098 = vmand %vm1097, %vm345
        %v1099 = vsel %vm1098, %v1094, 0.0
        %v1100 = vsub.f32 %v1087, %v1099
        %s1101 = scalar_lea.vmem %s232, 20 [#allocation6]
        %1102 = vst [vmem:[%s1101] sm:$0xf] %v1100
        %v1103 = vsel %vm1098, %v1094, %v1087
        %v1104 = vtanh.pop %v1103
        %v1105 = vtanh.pop %v1088
        %v1106 = vtanh.pop %v1089
        %v1107 = vtanh.pop %v1090
        %v1108 = vlaneseq
        %v1109 = vshrl.u32 %v1108, 7
        %v1110 = vsub.s32 4, %v1109
        %v1111 = vrot.slane %v1094, %v1110
        %v1112 = vmul.f32 %v278, %v1111
        %v1113 = vmul.f32 %v283, %v1111
        %v1114 = vmul.f32 %v288, %v1111
        %v1115 = vmul.f32 %v293, %v1111
        %1116 = vmatprep.subr.mxu0 0.0
        %1117 = vmatpush1.msra.mxu0 %v1104
        %1118 = vmatprep.subr.mxu0 0.0
        %1119 = vmatpush1.msra.mxu0 %v1105
        %1120 = vmatprep.subr.mxu0 0.0
        %1121 = vmatpush1.msra.mxu0 %v1106
        %1122 = vmatprep.subr.mxu0 0.0
        %1123 = vmatpush1.msra.mxu0 %v1107
        %1124 = vmatprep.subr.mxu0 0.0
        %1125 = vmatpush1.msra.mxu0 0.0
        %1126 = vmatprep.subr.mxu0 0.0
        %1127 = vmatpush1.msra.mxu0 0.0
        %1128 = vmatprep.subr.mxu0 0.0
        %1129 = vmatpush1.msra.mxu0 0.0
        %1130 = vmatprep.subr.mxu0 0.0
        %1131 = vmatpush1.msra.mxu0 0.0
        %1132 = vmatprep.subr.mxu0 0.0
        %1133 = vmatpush1.msra.mxu0 0.0
        %1134 = vmatprep.subr.mxu0 0.0
        %1135 = vmatpush1.msra.mxu0 0.0
        %1136 = vmatprep.subr.mxu0 0.0
        %1137 = vmatpush1.msra.mxu0 0.0
        %1138 = vmatprep.subr.mxu0 0.0
        %1139 = vmatpush1.msra.mxu0 0.0
        %1140 = vmatprep.subr.mxu0 0.0
        %1141 = vmatpush1.msra.mxu0 0.0
        %1142 = vmatprep.subr.mxu0 0.0
        %1143 = vmatpush1.msra.mxu0 0.0
        %1144 = vmatprep.subr.mxu0 0.0
        %1145 = vmatpush1.msra.mxu0 0.0
        %1146 = vmatprep.subr.mxu0 0.0
        %1147 = vmatpush1.msra.mxu0 0.0
        %1148 = vmatprep.subr.mxu0 0.0
        %1149 = vmatpush1.msra.mxu0 0.0
        %1150 = vmatprep.subr.mxu0 0.0
        %1151 = vmatpush1.msra.mxu0 0.0
        %1152 = vmatprep.subr.mxu0 0.0
        %1153 = vmatpush1.msra.mxu0 0.0
        %1154 = vmatprep.subr.mxu0 0.0
        %1155 = vmatpush1.msra.mxu0 0.0
        %1156 = vmatprep.subr.mxu0 0.0
        %1157 = vmatpush1.msra.mxu0 0.0
        %1158 = vmatprep.subr.mxu0 0.0
        %1159 = vmatpush1.msra.mxu0 0.0
        %1160 = vmatprep.subr.mxu0 0.0
        %1161 = vmatpush1.msra.mxu0 0.0
        %1162 = vmatprep.subr.mxu0 0.0
        %1163 = vmatpush1.msra.mxu0 0.0
        %1164 = vmatprep.subr.mxu0 0.0
        %1165 = vmatpush1.msra.mxu0 0.0
        %1166 = vmatprep.subr.mxu0 0.0
        %1167 = vmatpush1.msra.mxu0 0.0
        %1168 = vmatprep.subr.mxu0 0.0
        %1169 = vmatpush1.msra.mxu0 0.0
        %1170 = vmatprep.subr.mxu0 0.0
        %1171 = vmatpush1.msra.mxu0 0.0
        %1172 = vmatprep.subr.mxu0 0.0
        %1173 = vmatpush1.msra.mxu0 0.0
        %1174 = vmatprep.subr.mxu0 0.0
        %1175 = vmatpush1.msra.mxu0 0.0
        %1176 = vmatprep.subr.mxu0 0.0
        %1177 = vmatpush1.msra.mxu0 0.0
        %1178 = vmatprep.subr.mxu0 0.0
        %1179 = vmatpush1.msra.mxu0 0.0
        %1180 = vmatprep.mubr.f32.mxu0 0.0
        %1181 = vmatmul.mubr.f32.gmra.mrb[0].mxu0 %v375
        %v1182 = vpop.f32.mrb[0].mxu0
        %v1183 = vadd.f32 %v1112, %v1182
        %v1184 = vpop.f32.mrb[0].mxu0
        %1185 = vmatprep.mubr.f32.mxu0 0.0
        %1186 = vmatmul.mubr.f32.gmra.mrb[0].mxu0 %v378
        %v1187 = vpop.f32.mrb[0].mxu0
        %v1188 = vadd.f32 %v1113, %v1187
        %v1189 = vpop.f32.mrb[0].mxu0
        %1190 = vmatprep.mubr.f32.mxu0 0.0
        %1191 = vmatmul.mubr.f32.gmra.mrb[0].mxu0 %v381
        %v1192 = vpop.f32.mrb[0].mxu0
        %v1193 = vadd.f32 %v1114, %v1192
        %v1194 = vpop.f32.mrb[0].mxu0
        %1195 = vmatprep.mubr.f32.mxu0 0.0
        %1196 = vmatmul.mubr.f32.gmra.mrb[0].mxu0 %v384
        %v1197 = vpop.f32.mrb[0].mxu0
        %v1198 = vadd.f32 %v1115, %v1197
        %v1199 = vpop.f32.mrb[0].mxu0
        %1200 = vdwg.mxu0
        %v1201 = vlaneseq
        %v1202 = vshrl.u32 %v1201, 7
        %v1203 = vsub.s32 5, %v1202
        %v1204 = vrot.slane %v1094, %v1203
        %v1205 = vmul.f32 %v297, %v1204
        %v1206 = vmul.f32 %v301, %v1204
        %v1207 = vmul.f32 %v305, %v1204
        %v1208 = vmul.f32 %v309, %v1204
        %v1209 = vadd.f32 %v1183, %v1205
        %v1210 = vadd.f32 %v1188, %v1206
        %v1211 = vadd.f32 %v1193, %v1207
        %v1212 = vadd.f32 %v1198, %v1208
        %v1213 = vlaneseq
        %v1214 = vshrl.u32 %v1213, 7
        %v1215 = vsub.s32 6, %v1214
        %v1216 = vrot.slane %v1094, %v1215
        %v1217 = vmul.f32 %v313, %v1216
        %v1218 = vmul.f32 %v317, %v1216
        %v1219 = vmul.f32 %v321, %v1216
        %v1220 = vmul.f32 %v325, %v1216
        %v1221 = vadd.f32 %v1209, %v1217
        %v1222 = vadd.f32 %v1210, %v1218
        %v1223 = vadd.f32 %v1211, %v1219
        %v1224 = vadd.f32 %v1212, %v1220
        %v1225 = vlaneseq
        %v1226 = vshrl.u32 %v1225, 7
        %v1227 = vsub.s32 7, %v1226
        %v1228 = vrot.slane %v1094, %v1227
        %v1229 = vmul.f32 %v329, %v1228
        %v1230 = vmul.f32 %v333, %v1228
        %v1231 = vmul.f32 %v337, %v1228
        %v1232 = vmul.f32 %v341, %v1228
        %v1233 = vadd.f32 %v1221, %v1229
        %v1234 = vadd.f32 %v1222, %v1230
        %v1235 = vadd.f32 %v1223, %v1231
        %v1236 = vadd.f32 %v1224, %v1232
        %s1237 = sadd.s32 %s350, 6
        %p1238 = scmp.lt.s32.totalorder %s1237, 8
        %s1239 = scalar_lea.vmem %s208, 48 [#allocation3]
        %v1240 = vld [vmem:[%s1239] sm:$0xff]
        %s1241 = scalar_select %p1238, 1, 0
        %v1242 = vstv %s1241
        %vm1243 = vcmp.eq.s32.totalorder %v1242, 1
        %vm1244 = vmand %vm1243, %vm345
        %v1245 = vsel %vm1244, %v1240, 0.0
        %v1246 = vsub.f32 %v1233, %v1245
        %s1247 = scalar_lea.vmem %s232, 24 [#allocation6]
        %1248 = vst [vmem:[%s1247] sm:$0xf] %v1246
        %v1249 = vsel %vm1244, %v1240, %v1233
        %v1250 = vtanh.pop %v1249
        %v1251 = vtanh.pop %v1234
        %v1252 = vtanh.pop %v1235
        %v1253 = vtanh.pop %v1236
        %v1254 = vlaneseq
        %v1255 = vshrl.u32 %v1254, 7
        %v1256 = vsub.s32 4, %v1255
        %v1257 = vrot.slane %v1240, %v1256
        %v1258 = vmul.f32 %v278, %v1257
        %v1259 = vmul.f32 %v283, %v1257
        %v1260 = vmul.f32 %v288, %v1257
        %v1261 = vmul.f32 %v293, %v1257
        %1262 = vmatprep.subr.mxu0 0.0
        %1263 = vmatpush1.msra.mxu0 %v1250
        %1264 = vmatprep.subr.mxu0 0.0
        %1265 = vmatpush1.msra.mxu0 %v1251
        %1266 = vmatprep.subr.mxu0 0.0
        %1267 = vmatpush1.msra.mxu0 %v1252
        %1268 = vmatprep.subr.mxu0 0.0
        %1269 = vmatpush1.msra.mxu0 %v1253
        %1270 = vmatprep.subr.mxu0 0.0
        %1271 = vmatpush1.msra.mxu0 0.0
        %1272 = vmatprep.subr.mxu0 0.0
        %1273 = vmatpush1.msra.mxu0 0.0
        %1274 = vmatprep.subr.mxu0 0.0
        %1275 = vmatpush1.msra.mxu0 0.0
        %1276 = vmatprep.subr.mxu0 0.0
        %1277 = vmatpush1.msra.mxu0 0.0
        %1278 = vmatprep.subr.mxu0 0.0
        %1279 = vmatpush1.msra.mxu0 0.0
        %1280 = vmatprep.subr.mxu0 0.0
        %1281 = vmatpush1.msra.mxu0 0.0
        %1282 = vmatprep.subr.mxu0 0.0
        %1283 = vmatpush1.msra.mxu0 0.0
        %1284 = vmatprep.subr.mxu0 0.0
        %1285 = vmatpush1.msra.mxu0 0.0
        %1286 = vmatprep.subr.mxu0 0.0
        %1287 = vmatpush1.msra.mxu0 0.0
        %1288 = vmatprep.subr.mxu0 0.0
        %1289 = vmatpush1.msra.mxu0 0.0
        %1290 = vmatprep.subr.mxu0 0.0
        %1291 = vmatpush1.msra.mxu0 0.0
        %1292 = vmatprep.subr.mxu0 0.0
        %1293 = vmatpush1.msra.mxu0 0.0
        %1294 = vmatprep.subr.mxu0 0.0
        %1295 = vmatpush1.msra.mxu0 0.0
        %1296 = vmatprep.subr.mxu0 0.0
        %1297 = vmatpush1.msra.mxu0 0.0
        %1298 = vmatprep.subr.mxu0 0.0
        %1299 = vmatpush1.msra.mxu0 0.0
        %1300 = vmatprep.subr.mxu0 0.0
        %1301 = vmatpush1.msra.mxu0 0.0
        %1302 = vmatprep.subr.mxu0 0.0
        %1303 = vmatpush1.msra.mxu0 0.0
        %1304 = vmatprep.subr.mxu0 0.0
        %1305 = vmatpush1.msra.mxu0 0.0
        %1306 = vmatprep.subr.mxu0 0.0
        %1307 = vmatpush1.msra.mxu0 0.0
        %1308 = vmatprep.subr.mxu0 0.0
        %1309 = vmatpush1.msra.mxu0 0.0
        %1310 = vmatprep.subr.mxu0 0.0
        %1311 = vmatpush1.msra.mxu0 0.0
        %1312 = vmatprep.subr.mxu0 0.0
        %1313 = vmatpush1.msra.mxu0 0.0
        %1314 = vmatprep.subr.mxu0 0.0
        %1315 = vmatpush1.msra.mxu0 0.0
        %1316 = vmatprep.subr.mxu0 0.0
        %1317 = vmatpush1.msra.mxu0 0.0
        %1318 = vmatprep.subr.mxu0 0.0
        %1319 = vmatpush1.msra.mxu0 0.0
        %1320 = vmatprep.subr.mxu0 0.0
        %1321 = vmatpush1.msra.mxu0 0.0
        %1322 = vmatprep.subr.mxu0 0.0
        %1323 = vmatpush1.msra.mxu0 0.0
        %1324 = vmatprep.subr.mxu0 0.0
        %1325 = vmatpush1.msra.mxu0 0.0
        %1326 = vmatprep.mubr.f32.mxu0 0.0
        %1327 = vmatmul.mubr.f32.gmra.mrb[0].mxu0 %v375
        %v1328 = vpop.f32.mrb[0].mxu0
        %v1329 = vadd.f32 %v1258, %v1328
        %v1330 = vpop.f32.mrb[0].mxu0
        %1331 = vmatprep.mubr.f32.mxu0 0.0
        %1332 = vmatmul.mubr.f32.gmra.mrb[0].mxu0 %v378
        %v1333 = vpop.f32.mrb[0].mxu0
        %v1334 = vadd.f32 %v1259, %v1333
        %v1335 = vpop.f32.mrb[0].mxu0
        %1336 = vmatprep.mubr.f32.mxu0 0.0
        %1337 = vmatmul.mubr.f32.gmra.mrb[0].mxu0 %v381
        %v1338 = vpop.f32.mrb[0].mxu0
        %v1339 = vadd.f32 %v1260, %v1338
        %v1340 = vpop.f32.mrb[0].mxu0
        %1341 = vmatprep.mubr.f32.mxu0 0.0
        %1342 = vmatmul.mubr.f32.gmra.mrb[0].mxu0 %v384
        %v1343 = vpop.f32.mrb[0].mxu0
        %v1344 = vadd.f32 %v1261, %v1343
        %v1345 = vpop.f32.mrb[0].mxu0
        %1346 = vdwg.mxu0
        %v1347 = vlaneseq
        %v1348 = vshrl.u32 %v1347, 7
        %v1349 = vsub.s32 5, %v1348
        %v1350 = vrot.slane %v1240, %v1349
        %v1351 = vmul.f32 %v297, %v1350
        %v1352 = vmul.f32 %v301, %v1350
        %v1353 = vmul.f32 %v305, %v1350
        %v1354 = vmul.f32 %v309, %v1350
        %v1355 = vadd.f32 %v1329, %v1351
        %v1356 = vadd.f32 %v1334, %v1352
        %v1357 = vadd.f32 %v1339, %v1353
        %v1358 = vadd.f32 %v1344, %v1354
        %v1359 = vlaneseq
        %v1360 = vshrl.u32 %v1359, 7
        %v1361 = vsub.s32 6, %v1360
        %v1362 = vrot.slane %v1240, %v1361
        %v1363 = vmul.f32 %v313, %v1362
        %v1364 = vmul.f32 %v317, %v1362
        %v1365 = vmul.f32 %v321, %v1362
        %v1366 = vmul.f32 %v325, %v1362
        %v1367 = vadd.f32 %v1355, %v1363
        %v1368 = vadd.f32 %v1356, %v1364
        %v1369 = vadd.f32 %v1357, %v1365
        %v1370 = vadd.f32 %v1358, %v1366
        %v1371 = vlaneseq
        %v1372 = vshrl.u32 %v1371, 7
        %v1373 = vsub.s32 7, %v1372
        %v1374 = vrot.slane %v1240, %v1373
        %v1375 = vmul.f32 %v329, %v1374
        %v1376 = vmul.f32 %v333, %v1374
        %v1377 = vmul.f32 %v337, %v1374
        %v1378 = vmul.f32 %v341, %v1374
        %v1379 = vadd.f32 %v1367, %v1375
        %v1380 = vadd.f32 %v1368, %v1376
        %v1381 = vadd.f32 %v1369, %v1377
        %v1382 = vadd.f32 %v1370, %v1378
        %s1383 = sadd.s32 %s350, 7
        %p1384 = scmp.lt.s32.totalorder %s1383, 8
        %s1385 = scalar_lea.vmem %s208, 56 [#allocation3]
        %v1386 = vld [vmem:[%s1385] sm:$0xff]
        %s1387 = scalar_select %p1384, 1, 0
        %v1388 = vstv %s1387
        %vm1389 = vcmp.eq.s32.totalorder %v1388, 1
        %vm1390 = vmand %vm1389, %vm345
        %v1391 = vsel %vm1390, %v1386, 0.0
        %v1392 = vsub.f32 %v1379, %v1391
        %s1393 = scalar_lea.vmem %s232, 28 [#allocation6]
        %1394 = vst [vmem:[%s1393] sm:$0xf] %v1392
        %v1395 = vsel %vm1390, %v1386, %v1379
        %v1396 = vtanh.pop %v1395
        %v1397 = vtanh.pop %v1380
        %v1398 = vtanh.pop %v1381
        %v1399 = vtanh.pop %v1382
        %v1400 = vlaneseq
        %v1401 = vshrl.u32 %v1400, 7
        %v1402 = vsub.s32 4, %v1401
        %v1403 = vrot.slane %v1386, %v1402
        %v1404 = vmul.f32 %v278, %v1403
        %v1405 = vmul.f32 %v283, %v1403
        %v1406 = vmul.f32 %v288, %v1403
        %v1407 = vmul.f32 %v293, %v1403
        %1408 = vmatprep.subr.mxu0 0.0
        %1409 = vmatpush1.msra.mxu0 %v1396
        %1410 = vmatprep.subr.mxu0 0.0
        %1411 = vmatpush1.msra.mxu0 %v1397
        %1412 = vmatprep.subr.mxu0 0.0
        %1413 = vmatpush1.msra.mxu0 %v1398
        %1414 = vmatprep.subr.mxu0 0.0
        %1415 = vmatpush1.msra.mxu0 %v1399
        %1416 = vmatprep.subr.mxu0 0.0
        %1417 = vmatpush1.msra.mxu0 0.0
        %1418 = vmatprep.subr.mxu0 0.0
        %1419 = vmatpush1.msra.mxu0 0.0
        %1420 = vmatprep.subr.mxu0 0.0
        %1421 = vmatpush1.msra.mxu0 0.0
        %1422 = vmatprep.subr.mxu0 0.0
        %1423 = vmatpush1.msra.mxu0 0.0
        %1424 = vmatprep.subr.mxu0 0.0
        %1425 = vmatpush1.msra.mxu0 0.0
        %1426 = vmatprep.subr.mxu0 0.0
        %1427 = vmatpush1.msra.mxu0 0.0
        %1428 = vmatprep.subr.mxu0 0.0
        %1429 = vmatpush1.msra.mxu0 0.0
        %1430 = vmatprep.subr.mxu0 0.0
        %1431 = vmatpush1.msra.mxu0 0.0
        %1432 = vmatprep.subr.mxu0 0.0
        %1433 = vmatpush1.msra.mxu0 0.0
        %1434 = vmatprep.subr.mxu0 0.0
        %1435 = vmatpush1.msra.mxu0 0.0
        %1436 = vmatprep.subr.mxu0 0.0
        %1437 = vmatpush1.msra.mxu0 0.0
        %1438 = vmatprep.subr.mxu0 0.0
        %1439 = vmatpush1.msra.mxu0 0.0
        %1440 = vmatprep.subr.mxu0 0.0
        %1441 = vmatpush1.msra.mxu0 0.0
        %1442 = vmatprep.subr.mxu0 0.0
        %1443 = vmatpush1.msra.mxu0 0.0
        %1444 = vmatprep.subr.mxu0 0.0
        %1445 = vmatpush1.msra.mxu0 0.0
        %1446 = vmatprep.subr.mxu0 0.0
        %1447 = vmatpush1.msra.mxu0 0.0
        %1448 = vmatprep.subr.mxu0 0.0
        %1449 = vmatpush1.msra.mxu0 0.0
        %1450 = vmatprep.subr.mxu0 0.0
        %1451 = vmatpush1.msra.mxu0 0.0
        %1452 = vmatprep.subr.mxu0 0.0
        %1453 = vmatpush1.msra.mxu0 0.0
        %1454 = vmatprep.subr.mxu0 0.0
        %1455 = vmatpush1.msra.mxu0 0.0
        %1456 = vmatprep.subr.mxu0 0.0
        %1457 = vmatpush1.msra.mxu0 0.0
        %1458 = vmatprep.subr.mxu0 0.0
        %1459 = vmatpush1.msra.mxu0 0.0
        %1460 = vmatprep.subr.mxu0 0.0
        %1461 = vmatpush1.msra.mxu0 0.0
        %1462 = vmatprep.subr.mxu0 0.0
        %1463 = vmatpush1.msra.mxu0 0.0
        %1464 = vmatprep.subr.mxu0 0.0
        %1465 = vmatpush1.msra.mxu0 0.0
        %1466 = vmatprep.subr.mxu0 0.0
        %1467 = vmatpush1.msra.mxu0 0.0
        %1468 = vmatprep.subr.mxu0 0.0
        %1469 = vmatpush1.msra.mxu0 0.0
        %1470 = vmatprep.subr.mxu0 0.0
        %1471 = vmatpush1.msra.mxu0 0.0
        %1472 = vmatprep.mubr.f32.mxu0 0.0
        %1473 = vmatmul.mubr.f32.gmra.mrb[0].mxu0 %v375
        %v1474 = vpop.f32.mrb[0].mxu0
        %v1475 = vadd.f32 %v1404, %v1474
        %v1476 = vpop.f32.mrb[0].mxu0
        %1477 = vmatprep.mubr.f32.mxu0 0.0
        %1478 = vmatmul.mubr.f32.gmra.mrb[0].mxu0 %v378
        %v1479 = vpop.f32.mrb[0].mxu0
        %v1480 = vadd.f32 %v1405, %v1479
        %v1481 = vpop.f32.mrb[0].mxu0
        %1482 = vmatprep.mubr.f32.mxu0 0.0
        %1483 = vmatmul.mubr.f32.gmra.mrb[0].mxu0 %v381
        %v1484 = vpop.f32.mrb[0].mxu0
        %v1485 = vadd.f32 %v1406, %v1484
        %v1486 = vpop.f32.mrb[0].mxu0
        %1487 = vmatprep.mubr.f32.mxu0 0.0
        %1488 = vmatmul.mubr.f32.gmra.mrb[0].mxu0 %v384
        %v1489 = vpop.f32.mrb[0].mxu0
        %v1490 = vadd.f32 %v1407, %v1489
        %v1491 = vpop.f32.mrb[0].mxu0
        %1492 = vdwg.mxu0
        %v1493 = vlaneseq
        %v1494 = vshrl.u32 %v1493, 7
        %v1495 = vsub.s32 5, %v1494
        %v1496 = vrot.slane %v1386, %v1495
        %v1497 = vmul.f32 %v297, %v1496
        %v1498 = vmul.f32 %v301, %v1496
        %v1499 = vmul.f32 %v305, %v1496
        %v1500 = vmul.f32 %v309, %v1496
        %v1501 = vadd.f32 %v1475, %v1497
        %v1502 = vadd.f32 %v1480, %v1498
        %v1503 = vadd.f32 %v1485, %v1499
        %v1504 = vadd.f32 %v1490, %v1500
        %v1505 = vlaneseq
        %v1506 = vshrl.u32 %v1505, 7
        %v1507 = vsub.s32 6, %v1506
        %v1508 = vrot.slane %v1386, %v1507
        %v1509 = vmul.f32 %v313, %v1508
        %v1510 = vmul.f32 %v317, %v1508
        %v1511 = vmul.f32 %v321, %v1508
        %v1512 = vmul.f32 %v325, %v1508
        %v1513 = vadd.f32 %v1501, %v1509
        %v1514 = vadd.f32 %v1502, %v1510
        %v1515 = vadd.f32 %v1503, %v1511
        %v1516 = vadd.f32 %v1504, %v1512
        %v1517 = vlaneseq
        %v1518 = vshrl.u32 %v1517, 7
        %v1519 = vsub.s32 7, %v1518
        %v1520 = vrot.slane %v1386, %v1519
        %v1521 = vmul.f32 %v329, %v1520
        %v1522 = vmul.f32 %v333, %v1520
        %v1523 = vmul.f32 %v337, %v1520
        %v1524 = vmul.f32 %v341, %v1520
        %v1525 = vadd.f32 %v1513, %v1521
        %v1526 = vadd.f32 %v1514, %v1522
        %v1527 = vadd.f32 %v1515, %v1523
        %v1528 = vadd.f32 %v1516, %v1524
        %1529 = vst [vmem:[#allocation2] sm:$0xff] %v1525
        %1530 = vst [vmem:[#allocation2 + $0x8] sm:$0xff] %v1526
        %1531 = vst [vmem:[#allocation2 + $0x10] sm:$0xff] %v1527
        %1532 = vst [vmem:[#allocation2 + $0x18] sm:$0xff] %v1528
        %s1533 = sand.u32 %s134, 1
        %s1534 = scalar_lea.sflag [#allocation5], %s1533
        %s1535 = sand.u32 %s134, 1
        %s1536 = smul.addr %s1535, 32
        %s1537 = scalar_lea.vmem [#allocation6], %s1536
        // Predicated region
        $region45: #{tpu_custom_call.1} parent=35 // pred_check
          %p1538 = pneg %p144
        $region46: #{tpu_custom_call.1} parent=35 // pred_check_branch
          %1540 = sbr.rel (%p1538) target = $region48
        $region47: #{tpu_custom_call.1} parent=35 // pred_region
          %s1541 = smul.u32 8, %s26
          %s1543 = ssub.s32 512, 512
          %1544 = vsyncadd %s1534, %s1543
          %s1545 = sadd.s32 %s25, %s1541
          %s1546 = smul.addr %s1545, 64
          %s1547 = scalar_lea.hbm %s4, %s1546
          %s1548 = sshll.u32 %s1537, 4
          %s1549 = int_to_ptr.vmem [resolvable:$true] %s1548
          %1554 = dma.vmem_to_hbm [thread:$0]  %s1549, 512, %s1547, %s1534, 64, 64, 4
        $region48: #{tpu_custom_call.1} parent=35 // pred_fallthru
          _
      $region36: #{tpu_custom_call.1} parent=5 // pred_fallthru
        _
      %p1555 = scmp.le.s32.totalorder 2, %s16
      // Predicated region
      $region49: #{tpu_custom_call.1} parent=5 // pred_check
        %p1556 = pneg %p1555
      $region50: #{tpu_custom_call.1} parent=5 // pred_check_branch
        %1558 = sbr.rel (%p1556) target = $region52
      $region51: #{tpu_custom_call.1} parent=5 // pred_region
        %s1559 = ssub.s32 %s16, 2
        // Predicated region
        $region53: #{tpu_custom_call.1} parent=51 // pred_check
          %p1560 = pneg %p150
        $region54: #{tpu_custom_call.1} parent=51 // pred_check_branch
          %1562 = sbr.rel (%p1560) target = $region56
        $region55: #{tpu_custom_call.1} parent=51 // pred_region
          %s1563 = sand.u32 %s135, 1
          %s1564 = scalar_lea.sflag [#allocation5], %s1563
          %s1565 = sand.u32 %s135, 1
          %s1566 = smul.addr %s1565, 32
          %s1567 = scalar_lea.vmem [#allocation6], %s1566
          %1568 = dma.done %s1564, 512
        $region56: #{tpu_custom_call.1} parent=51 // pred_fallthru
          _
      $region52: #{tpu_custom_call.1} parent=5 // pred_fallthru
        _
    $region6: #{tpu_custom_call.1} parent=1 // loop_footer
      %s20 = sadd.s32 1, %s16
    $region7: #{tpu_custom_call.1} parent=1 // loop_footer_branch
      %15 = sbr.rel target = $region3
    $region8: #{tpu_custom_call.1} parent=1 // loop_exit
      _
    %1569 = vsyncpa [#allocation4], 1
    %s1570 = scalar_lea.sflag [#allocation4], 1
    %1571 = vsyncpa %s1570, 1
    %1572 = vsyncpa [#allocation5], 1
    %s1573 = scalar_lea.sflag [#allocation5], 1
    %1574 = vsyncpa %s1573, 1

</llo_original>
